<compile_context>
chip_gen: v6e
topology: v6e:2x2x1
jax: 0.10.0
libtpu: 0.0.40
codegen_flags: <defaults>
</compile_context>

<pallas_src>
import functools

import jax
import jax.numpy as jnp
from jax import lax
from jax.experimental import pallas as pl
from jax.experimental.pallas import tpu as pltpu

# Constants from the PyTorch module.
FILTER_SIZES = (2, 3, 4)
N_FILTERS = 100
NF_PAD = 128                        # filter axis zero-padded to a full lane width
N_TAPS = sum(FILTER_SIZES)          # 9 temporal taps total
N_FS = len(FILTER_SIZES)
MAX_FS = max(FILTER_SIZES)
OUTPUT_DIM = 2

# Column-block base (in units of NF_PAD) of tap 0 of each filter size.
_TAP_BASE = []
_c = 0
for _fs in FILTER_SIZES:
    _TAP_BASE.append(_c)
    _c += _fs


def conv_pool_kernel(x_ref, w_ref, b_ref, out_ref, *, time_chunk):
    """One batch tile: fused conv (all 9 taps) + bias + ReLU + max-pool.

    x_ref  : (TB, S, H)                  f32  XLNet hidden states tile
    w_ref  : (H, N_TAPS*NF_PAD)          bf16 all conv taps, filter axis padded
    b_ref  : (N_FS, NF_PAD)              f32  conv biases (zero padded)
    out_ref: (TB, N_FS*NF_PAD)           f32  pooled features (lane-dense)
    """
    TB, S, H = x_ref.shape

    # Time-chunk sizing (all static).  Overlapping windows carry the
    # (MAX_FS-1)-row halo; the last window start is clamped in-bounds (the
    # resulting overlap is harmless because the pooled max is idempotent).
    C = max(8, 8 * pl.cdiv(time_chunk, 8))
    halo_pad = 8 * pl.cdiv(MAX_FS - 1, 8)          # sublane-aligned halo (8)
    if S <= C + halo_pad:
        num_chunks, C, W = 1, S, S                 # single window = full S
    else:
        W = C + halo_pad
        num_chunks = pl.cdiv(S, C)

    b_all = b_ref[...]                             # (N_FS, NF_PAD) f32

    def chunk_body(ci, pooled):
        start = pl.multiple_of(jnp.minimum(ci * C, S - W), 8)
        x_win = x_ref[:, pl.ds(start, W), :]       # (TB, W, H) f32
        # Cast to bf16 in VMEM and flatten (TB, W) so the MXU sees ONE
        # (TB*W, H) x (H, 9*128) matmul at full cadence.
        x2d = x_win.reshape(TB * W, H).astype(jnp.bfloat16)
        y = jnp.dot(x2d, w_ref[...], preferred_element_type=jnp.float32)
        y = y.reshape(TB, W, N_TAPS * NF_PAD)      # (TB, W, 9*128) f32

        outs = []
        for idx, fs in enumerate(FILTER_SIZES):
            base = _TAP_BASE[idx]
            # Tap 0 + bias initializes the accumulator (no zeros/bias pass).
            acc = (y[:, :, base * NF_PAD:(base + 1) * NF_PAD]
                   + b_all[idx][None, None, :])    # (TB, W, NF_PAD) f32
            # Taps j>=1 via sublane roll (XLU) — avoids unaligned sublane
            # slices and their relayout copies.
            for j in range(1, fs):
                col = base + j
                tap = y[:, :, col * NF_PAD:(col + 1) * NF_PAD]
                acc = acc + pltpu.roll(tap, shift=W - j, axis=1)
            acc = jnp.maximum(acc, 0.0)            # ReLU
            # Zero rows whose taps fell past the window end (incl. rolled
            # wrap-around).  Exact: ReLU output >= 0 so the true max is >= 0.
            t_idx = lax.broadcasted_iota(jnp.int32, acc.shape, 1)
            acc = jnp.where(t_idx <= W - fs, acc, 0.0)
            outs.append(jnp.max(acc, axis=1))      # (TB, NF_PAD) max over time
        return jnp.maximum(pooled, jnp.concatenate(outs, axis=1))

    init = jnp.zeros((TB, N_FS * NF_PAD), jnp.float32)
    if num_chunks == 1:
        pooled = chunk_body(0, init)
    else:
        pooled = lax.fori_loop(0, num_chunks, chunk_body, init,
                               unroll=num_chunks <= 4)
    out_ref[...] = pooled.astype(out_ref.dtype)


def _default_vmem_limit_bytes():
    """~48 MiB on v7x (64 MiB physical), 96 MiB on v5e/v6e (128 MiB physical)."""
    try:
        cap = pltpu.get_tpu_info().vmem_capacity_bytes
    except Exception:
        cap = 64 * 1024 * 1024
    return int(min((cap * 3) // 4, 96 * 1024 * 1024))


def xlnet_cnn_forward(x, params, *, batch_tile=None, time_chunk=128,
                      vmem_limit_bytes=None):
    """x: (B, S, H) f32 XLNet last_hidden_state.  Returns (B, OUTPUT_DIM) f32."""
    B, S, H = x.shape
    assert S % 8 == 0 and S >= MAX_FS, "sequence length must be >=4 and 8-aligned"
    if batch_tile is None:
        batch_tile = min(B, 8)
        # Prefer an even number of grid steps so v7x's two TensorCores shard
        # the "parallel" batch axis evenly.
        if B > batch_tile and (B // batch_tile) % 2 == 1 and batch_tile % 2 == 0:
            batch_tile //= 2
    assert B % batch_tile == 0, "batch must be divisible by batch_tile"
    if vmem_limit_bytes is None:
        vmem_limit_bytes = _default_vmem_limit_bytes()
    grid = (B // batch_tile,)

    kernel = functools.partial(conv_pool_kernel, time_chunk=time_chunk)

    pooled = pl.pallas_call(
        kernel,
        out_shape=jax.ShapeDtypeStruct((B, N_FS * NF_PAD), jnp.float32),
        grid_spec=pltpu.PrefetchScalarGridSpec(
            num_scalar_prefetch=0,
            grid=grid,
            in_specs=[
                pl.BlockSpec((batch_tile, S, H), lambda i: (i, 0, 0)),
                pl.BlockSpec((H, N_TAPS * NF_PAD), lambda i: (0, 0)),
                pl.BlockSpec((N_FS, NF_PAD), lambda i: (0, 0)),
            ],
            out_specs=pl.BlockSpec((batch_tile, N_FS * NF_PAD),
                                   lambda i: (i, 0)),
        ),
        compiler_params=pltpu.CompilerParams(
            dimension_semantics=("parallel",),
            vmem_limit_bytes=int(vmem_limit_bytes),
        ),
    )(x, params['w_fused'], params['b_conv'])

    # Dropout: identity at inference.  Final Linear ((B,300)x(300,2)) is
    # negligible FLOPs — run it in plain JAX so the kernel output stays
    # lane-dense; slice off the zero-padded filter columns here.
    feat = jnp.concatenate(
        [pooled[:, i * NF_PAD:i * NF_PAD + N_FILTERS] for i in range(N_FS)],
        axis=1)                                    # (B, 3*N_FILTERS)
    return feat @ params['wfc'] + params['bfc']


def init_params(key, hidden):
    """Deterministic synthetic parameters matching the nn.Module shapes."""
    keys = jax.random.split(key, 2 * N_FS + 2)
    raw_w, raw_b = {}, {}
    for i, fs in enumerate(FILTER_SIZES):
        # torch Conv2d weight (n_filters, 1, fs, hidden) stored as (fs, hidden, n_filters)
        raw_w[fs] = 0.02 * jax.random.normal(
            keys[2 * i], (fs, hidden, N_FILTERS), jnp.float32)
        raw_b[fs] = 0.02 * jax.random.normal(
            keys[2 * i + 1], (N_FILTERS,), jnp.float32)
    wfc = 0.02 * jax.random.normal(
        keys[-2], (N_FS * N_FILTERS, OUTPUT_DIM), jnp.float32)
    bfc = 0.02 * jax.random.normal(keys[-1], (OUTPUT_DIM,), jnp.float32)

    # Fuse all 9 taps into one (H, 9*128) matrix, filter axis zero-padded 100->128.
    w_fused = jnp.zeros((hidden, N_TAPS * NF_PAD), jnp.float32)
    col = 0
    for fs in FILTER_SIZES:
        for j in range(fs):
            w_fused = w_fused.at[:, col * NF_PAD:col * NF_PAD + N_FILTERS].set(
                raw_w[fs][j])
            col += 1
    b_conv = jnp.zeros((N_FS, NF_PAD), jnp.float32)
    for i, fs in enumerate(FILTER_SIZES):
        b_conv = b_conv.at[i, :N_FILTERS].set(raw_b[fs])

    return {
        'w_fused': w_fused.astype(jnp.bfloat16),
        'b_conv': b_conv,
        'wfc': wfc,
        'bfc': bfc,
        'raw_w': raw_w,   # kept only for the pure-JAX reference check
        'raw_b': raw_b,
    }


def reference_forward(x, params):
    """Pure-JAX reference with the same bf16-in / f32-accumulate numerics."""
    xb = x.astype(jnp.bfloat16)
    B, S, _ = x.shape
    pooled = []
    for fs in FILTER_SIZES:
        w = params['raw_w'][fs].astype(jnp.bfloat16)
        b = params['raw_b'][fs]
        L = S - fs + 1
        acc = jnp.zeros((B, L, N_FILTERS), jnp.float32) + b[None, None, :]
        for j in range(fs):
            acc = acc + jnp.einsum('blh,hf->blf', xb[:, j:j + L, :], w[j],
                                   preferred_element_type=jnp.float32)
        acc = jnp.maximum(acc, 0.0)
        pooled.append(jnp.max(acc, axis=1))
    feat = jnp.concatenate(pooled, axis=1)
    return feat @ params['wfc'] + params['bfc']


if __name__ == "__main__":
    # Small demo shapes: batch=16 (grid of 2 tiles of 8), seq=16, hidden=128
    # (lane-dense; real XLNet-base is H=768, S up to 512).
    B, S, H = 16, 16, 128
    key = jax.random.PRNGKey(0)
    k_x, k_p = jax.random.split(key)

    # TODO(synk): XLNetModel.from_pretrained('xlnet-base-cased') has no Pallas
    # equivalent; `x` stands in for xlnet(ids, attention_mask=mask)[0].
    x = jax.random.normal(k_x, (B, S, H), jnp.float32)
    params = init_params(k_p, H)

    out = xlnet_cnn_forward(x, params)
    jax.block_until_ready(out)
    assert out.shape == (B, OUTPUT_DIM) and out.dtype == jnp.float32

    ref = reference_forward(x, params)
    assert jnp.allclose(out, ref, atol=5e-2, rtol=5e-2), (
        "max abs err", float(jnp.max(jnp.abs(out - ref))))

    # Exercise the multi-chunk (time-chunked running-max) path as well.
    S2 = 64
    x2 = jax.random.normal(jax.random.PRNGKey(1), (B, S2, H), jnp.float32)
    out2 = xlnet_cnn_forward(x2, params, time_chunk=32)
    jax.block_until_ready(out2)
    ref2 = reference_forward(x2, params)
    assert jnp.allclose(out2, ref2, atol=5e-2, rtol=5e-2), (
        "max abs err (chunked)", float(jnp.max(jnp.abs(out2 - ref2))))

    print("KERNEL_OK")
</pallas_src>

<mosaic_0001>
module attributes {stable_mosaic.version = 11 : i64} {
  func.func @conv_pool_kernel(%arg0: i32, %arg1: memref<8x16x128xf32, #tpu.memory_space<vmem>>, %arg2: memref<128x1152xbf16, #tpu.memory_space<vmem>>, %arg3: memref<3x128xf32, #tpu.memory_space<vmem>>, %arg4: memref<8x384xf32, #tpu.memory_space<vmem>>) attributes {dimension_semantics = [#tpu.dimension_semantics<parallel>], iteration_bounds = array<i64: 2>, scalar_prefetch = 0 : i64, scratch_operands = 0 : i64, tpu.core_type = #tpu.core_type<tc>, window_params = [{transform_indices = @transform_0, window_bounds = array<i64: 8, 16, 128>}, {pipeline_mode = #tpu.pipeline_mode<synchronous>, transform_indices = @transform_1, window_bounds = array<i64: 128, 1152>}, {pipeline_mode = #tpu.pipeline_mode<synchronous>, transform_indices = @transform_2, window_bounds = array<i64: 3, 128>}, {transform_indices = @transform_3, window_bounds = array<i64: 8, 384>}]} {
    %c0 = arith.constant 0 : index
    %c0_0 = arith.constant 0 : index
    %0 = vector.load %arg3[%c0, %c0_0] : memref<3x128xf32, #tpu.memory_space<vmem>>, vector<3x128xf32>
    %cst = arith.constant 0.000000e+00 : f32
    %1 = vector.broadcast %cst : f32 to vector<8x384xf32>
    %c0_i32 = arith.constant 0 : i32
    %c0_i32_1 = arith.constant 0 : i32
    %2 = arith.minsi %c0_i32, %c0_i32_1 : i32
    %3 = tpu.assume_multiple %2, 8 : i32
    %c0_2 = arith.constant 0 : index
    %4 = arith.index_cast %3 : i32 to index
    %c0_3 = arith.constant 0 : index
    %5 = vector.load %arg1[%c0_2, %4, %c0_3] : memref<8x16x128xf32, #tpu.memory_space<vmem>>, vector<8x16x128xf32>
    %6 = vector.shape_cast %5 : vector<8x16x128xf32> to vector<128x128xf32>
    %7 = arith.truncf %6 : vector<128x128xf32> to vector<128x128xbf16>
    %c0_4 = arith.constant 0 : index
    %c0_5 = arith.constant 0 : index
    %8 = vector.load %arg2[%c0_4, %c0_5] : memref<128x1152xbf16, #tpu.memory_space<vmem>>, vector<128x1152xbf16>
    %cst_6 = arith.constant dense<0.000000e+00> : vector<128x1152xf32>
    %9 = tpu.matmul %7, %8, %cst_6 {dimension_numbers = #tpu.dot_dimension_numbers<[1], [0], [0], [1], [0, 0, 1, 1], [], []>} : vector<128x128xbf16>, vector<128x1152xbf16>, vector<128x1152xf32> -> vector<128x1152xf32>
    %10 = vector.shape_cast %9 : vector<128x1152xf32> to vector<8x16x1152xf32>
    %11 = vector.extract_strided_slice %10 {offsets = [0, 0, 0], sizes = [8, 16, 128], strides = [1, 1, 1]} : vector<8x16x1152xf32> to vector<8x16x128xf32>
    %12 = vector.extract_strided_slice %0 {offsets = [0, 0], sizes = [1, 128], strides = [1, 1]} : vector<3x128xf32> to vector<1x128xf32>
    %13 = vector.shape_cast %12 : vector<1x128xf32> to vector<128xf32>
    %14 = vector.shape_cast %13 : vector<128xf32> to vector<1x1x128xf32>
    %15 = vector.broadcast %14 : vector<1x1x128xf32> to vector<8x16x128xf32>
    %16 = arith.addf %11, %15 : vector<8x16x128xf32>
    %17 = vector.extract_strided_slice %10 {offsets = [0, 0, 128], sizes = [8, 16, 128], strides = [1, 1, 1]} : vector<8x16x1152xf32> to vector<8x16x128xf32>
    %c15_i32 = arith.constant 15 : i32
    %18 = tpu.dynamic_rotate %17 by %c15_i32 dim 1 : vector<8x16x128xf32>, i32 -> vector<8x16x128xf32>
    %19 = arith.addf %16, %18 : vector<8x16x128xf32>
    %cst_7 = arith.constant 0.000000e+00 : f32
    %20 = vector.broadcast %cst_7 : f32 to vector<8x16x128xf32>
    %21 = arith.maximumf %19, %20 : vector<8x16x128xf32>
    %22 = tpu.iota {dimensions = array<i32: 1>} : vector<8x16x128xi32>
    %c14_i32 = arith.constant 14 : i32
    %23 = vector.broadcast %c14_i32 : i32 to vector<8x16x128xi32>
    %24 = arith.cmpi sle, %22, %23 : vector<8x16x128xi32>
    %cst_8 = arith.constant 0.000000e+00 : f32
    %25 = vector.broadcast %cst_8 : f32 to vector<8x16x128xf32>
    %26 = arith.select %24, %21, %25 : vector<8x16x128xi1>, vector<8x16x128xf32>
    %cst_9 = arith.constant dense<0xFF800000> : vector<8x128xf32>
    %27 = vector.multi_reduction <maximumf>, %26, %cst_9 [1] : vector<8x16x128xf32> to vector<8x128xf32>
    %28 = vector.extract_strided_slice %10 {offsets = [0, 0, 256], sizes = [8, 16, 128], strides = [1, 1, 1]} : vector<8x16x1152xf32> to vector<8x16x128xf32>
    %29 = vector.extract_strided_slice %0 {offsets = [1, 0], sizes = [1, 128], strides = [1, 1]} : vector<3x128xf32> to vector<1x128xf32>
    %30 = vector.shape_cast %29 : vector<1x128xf32> to vector<128xf32>
    %31 = vector.shape_cast %30 : vector<128xf32> to vector<1x1x128xf32>
    %32 = vector.broadcast %31 : vector<1x1x128xf32> to vector<8x16x128xf32>
    %33 = arith.addf %28, %32 : vector<8x16x128xf32>
    %34 = vector.extract_strided_slice %10 {offsets = [0, 0, 384], sizes = [8, 16, 128], strides = [1, 1, 1]} : vector<8x16x1152xf32> to vector<8x16x128xf32>
    %c15_i32_10 = arith.constant 15 : i32
    %35 = tpu.dynamic_rotate %34 by %c15_i32_10 dim 1 : vector<8x16x128xf32>, i32 -> vector<8x16x128xf32>
    %36 = arith.addf %33, %35 : vector<8x16x128xf32>
    %37 = vector.extract_strided_slice %10 {offsets = [0, 0, 512], sizes = [8, 16, 128], strides = [1, 1, 1]} : vector<8x16x1152xf32> to vector<8x16x128xf32>
    %c14_i32_11 = arith.constant 14 : i32
    %38 = tpu.dynamic_rotate %37 by %c14_i32_11 dim 1 : vector<8x16x128xf32>, i32 -> vector<8x16x128xf32>
    %39 = arith.addf %36, %38 : vector<8x16x128xf32>
    %cst_12 = arith.constant 0.000000e+00 : f32
    %40 = vector.broadcast %cst_12 : f32 to vector<8x16x128xf32>
    %41 = arith.maximumf %39, %40 : vector<8x16x128xf32>
    %42 = tpu.iota {dimensions = array<i32: 1>} : vector<8x16x128xi32>
    %c13_i32 = arith.constant 13 : i32
    %43 = vector.broadcast %c13_i32 : i32 to vector<8x16x128xi32>
    %44 = arith.cmpi sle, %42, %43 : vector<8x16x128xi32>
    %cst_13 = arith.constant 0.000000e+00 : f32
    %45 = vector.broadcast %cst_13 : f32 to vector<8x16x128xf32>
    %46 = arith.select %44, %41, %45 : vector<8x16x128xi1>, vector<8x16x128xf32>
    %cst_14 = arith.constant dense<0xFF800000> : vector<8x128xf32>
    %47 = vector.multi_reduction <maximumf>, %46, %cst_14 [1] : vector<8x16x128xf32> to vector<8x128xf32>
    %48 = vector.extract_strided_slice %10 {offsets = [0, 0, 640], sizes = [8, 16, 128], strides = [1, 1, 1]} : vector<8x16x1152xf32> to vector<8x16x128xf32>
    %49 = vector.extract_strided_slice %0 {offsets = [2, 0], sizes = [1, 128], strides = [1, 1]} : vector<3x128xf32> to vector<1x128xf32>
    %50 = vector.shape_cast %49 : vector<1x128xf32> to vector<128xf32>
    %51 = vector.shape_cast %50 : vector<128xf32> to vector<1x1x128xf32>
    %52 = vector.broadcast %51 : vector<1x1x128xf32> to vector<8x16x128xf32>
    %53 = arith.addf %48, %52 : vector<8x16x128xf32>
    %54 = vector.extract_strided_slice %10 {offsets = [0, 0, 768], sizes = [8, 16, 128], strides = [1, 1, 1]} : vector<8x16x1152xf32> to vector<8x16x128xf32>
    %c15_i32_15 = arith.constant 15 : i32
    %55 = tpu.dynamic_rotate %54 by %c15_i32_15 dim 1 : vector<8x16x128xf32>, i32 -> vector<8x16x128xf32>
    %56 = arith.addf %53, %55 : vector<8x16x128xf32>
    %57 = vector.extract_strided_slice %10 {offsets = [0, 0, 896], sizes = [8, 16, 128], strides = [1, 1, 1]} : vector<8x16x1152xf32> to vector<8x16x128xf32>
    %c14_i32_16 = arith.constant 14 : i32
    %58 = tpu.dynamic_rotate %57 by %c14_i32_16 dim 1 : vector<8x16x128xf32>, i32 -> vector<8x16x128xf32>
    %59 = arith.addf %56, %58 : vector<8x16x128xf32>
    %60 = vector.extract_strided_slice %10 {offsets = [0, 0, 1024], sizes = [8, 16, 128], strides = [1, 1, 1]} : vector<8x16x1152xf32> to vector<8x16x128xf32>
    %c13_i32_17 = arith.constant 13 : i32
    %61 = tpu.dynamic_rotate %60 by %c13_i32_17 dim 1 : vector<8x16x128xf32>, i32 -> vector<8x16x128xf32>
    %62 = arith.addf %59, %61 : vector<8x16x128xf32>
    %cst_18 = arith.constant 0.000000e+00 : f32
    %63 = vector.broadcast %cst_18 : f32 to vector<8x16x128xf32>
    %64 = arith.maximumf %62, %63 : vector<8x16x128xf32>
    %65 = tpu.iota {dimensions = array<i32: 1>} : vector<8x16x128xi32>
    %c12_i32 = arith.constant 12 : i32
    %66 = vector.broadcast %c12_i32 : i32 to vector<8x16x128xi32>
    %67 = arith.cmpi sle, %65, %66 : vector<8x16x128xi32>
    %cst_19 = arith.constant 0.000000e+00 : f32
    %68 = vector.broadcast %cst_19 : f32 to vector<8x16x128xf32>
    %69 = arith.select %67, %64, %68 : vector<8x16x128xi1>, vector<8x16x128xf32>
    %cst_20 = arith.constant dense<0xFF800000> : vector<8x128xf32>
    %70 = vector.multi_reduction <maximumf>, %69, %cst_20 [1] : vector<8x16x128xf32> to vector<8x128xf32>
    %71 = tpu.concatenate %27, %47, %70 in 1 : vector<8x128xf32>, vector<8x128xf32>, vector<8x128xf32> -> vector<8x384xf32>
    %72 = arith.maximumf %1, %71 : vector<8x384xf32>
    %c0_21 = arith.constant 0 : index
    %c0_22 = arith.constant 0 : index
    %73 = vector.load %arg4[%c0_21, %c0_22] : memref<8x384xf32, #tpu.memory_space<vmem>>, vector<8x384xf32>
    tpu.vector_store %arg4[%c0_21, %c0_22], %72 {strides = array<i32>} : memref<8x384xf32, #tpu.memory_space<vmem>>, vector<8x384xf32>,
    return
  }
  func.func @transform_0(%arg0: i32) -> (i32, i32, i32) {
    %c0_i32 = arith.constant 0 : i32
    %c0_i32_0 = arith.constant 0 : i32
    %c0_i32_1 = arith.constant 0 : i32
    return %arg0, %c0_i32, %c0_i32_0 : i32, i32, i32
  }
  func.func @transform_1(%arg0: i32) -> (i32, i32) {
    %c0_i32 = arith.constant 0 : i32
    %c0_i32_0 = arith.constant 0 : i32
    %c0_i32_1 = arith.constant 0 : i32
    return %c0_i32, %c0_i32_0 : i32, i32
  }
  func.func @transform_2(%arg0: i32) -> (i32, i32) {
    %c0_i32 = arith.constant 0 : i32
    %c0_i32_0 = arith.constant 0 : i32
    %c0_i32_1 = arith.constant 0 : i32
    return %c0_i32, %c0_i32_0 : i32, i32
  }
  func.func @transform_3(%arg0: i32) -> (i32, i32) {
    %c0_i32 = arith.constant 0 : i32
    %c0_i32_0 = arith.constant 0 : i32
    return %arg0, %c0_i32 : i32, i32
  }
}

</mosaic_0001>

<llo_original>
// kernel: tpu_custom_call.1
$region0: #{tpu_custom_call.1}
  #allocation0 [shape = 'u32[]', space=smem, size = 0x4, offset = 0x4, fixed_abs, tag = 'smem constant byte address 0x4 - core index']
  #allocation1 [shape = 'u32[144,128]{1,0:T(1,128)}', space=vmem, size = 0x12000, scoped, tag = 'internal scratch']
  %s0 = inlined_call_operand.hbm [shape: f32[16,16,128], index: 0, kind: input, shape index: {}]
  %s1 = inlined_call_operand.hbm [shape: bf16[128,1152], index: 1, kind: input, shape index: {}]
  %s2 = inlined_call_operand.hbm [shape: f32[3,128], index: 2, kind: input, shape index: {}]
  %s3 = inlined_call_operand.hbm [shape: f32[16,384], index: 3, kind: output, shape index: {}]
  %s4 = sld [smem:[#allocation0]]
  $region57: #{tpu_custom_call.1} parent=0
    _
  %s6 = ssub.s32 1, %s4
  %s7 = scalar_select 0, %s6, %s4
  $region1: #{tpu_custom_call.1} parent=0
    #allocation2 [shape = 'u8[131072]{0}', space=vmem, size = 0x20000, scoped, tag = 'input window, operand 0']
    #allocation3 [shape = 's32[2]{0}', space=sflag, size = 0x8, scoped, tag = 'scoped memory for tpu_custom_call.1']
    #allocation4 [shape = 's32[2]{0}', space=sflag, size = 0x8, scoped, tag = 'scoped memory for tpu_custom_call.1']
    #allocation5 [shape = 'u8[294912]{0}', space=vmem, size = 0x48000, scoped, tag = 'input window, operand 1, single buffered']
    #allocation6 [shape = 's32[1]{0}', space=sflag, size = 0x4, scoped, tag = 'scoped memory for tpu_custom_call.1']
    #allocation7 [shape = 'u8[2048]{0}', space=vmem, size = 0x800, scoped, tag = 'input window, operand 2, single buffered']
    #allocation8 [shape = 'u8[24576]{0}', space=vmem, size = 0x6000, scoped, tag = 'output window, operand 0']
    %8 = vsyncpa [#allocation3], 0
    %s9 = scalar_lea.sflag [#allocation3], 1
    %10 = vsyncpa %s9, 0
    %11 = vsyncpa [#allocation6], 0
    %12 = vsyncpa [#allocation4], 0
    %s13 = scalar_lea.sflag [#allocation4], 1
    %14 = vsyncpa %s13, 0
    loop: start=0, step=1, limit=4
    $region2: #{tpu_custom_call.1} parent=1 // loop_pre_header
      _
    $region3: #{tpu_custom_call.1} parent=1 // loop_header
      %s16 = sphi 0, %s20
      %p17 = scmp.ge.s32.totalorder %s16, 4
      %s26 = sphi 0, %s28
      %s29 = sphi 0, %s26
      %s30 = sphi 0, %s29
      %s46 = sphi 0, %s30
      %s50 = sphi 0, %s50
      %s52 = sphi 0, %s50
      %s53 = sphi 0, %s52
      %s67 = sphi 0, %s53
      %s71 = sphi 0, %s71
      %s73 = sphi 0, %s71
      %s74 = sphi 0, %s73
      %s88 = sphi 0, %s74
      %s94 = sphi 0, %s96
      %s97 = sphi 0, %s94
      %s98 = sphi 0, %s97
      %s114 = sphi 0, %s98
    $region4: #{tpu_custom_call.1} parent=1 // loop_header_branch
      %19 = sbr.rel (%p17) target = $region8
    $region5: #{tpu_custom_call.1} parent=1 // loop_body
      %s21 = ssub.s32 %s16, 1
      %s22 = ssub.s32 %s16, 2
      %s23 = sadd.s32 %s16, 1
      %s24 = ssub.s32 %s16, %s23
      %p25 = scmp.eq.s32.totalorder %s24, 0
      %s27 = sadd.s32 %s26, 1
      %s28 = scalar_select %p25, %s26, %s27
      %p31 = pneg %p25
      %p32 = scmp.eq.s32.totalorder %s16, 1
      %p33 = por %p31, %p32
      %p34 = scmp.ne.s32.totalorder %s26, %s29
      %p35 = scmp.eq.s32.totalorder %s16, 0
      %p36 = por %p34, %p35
      %p37 = scmp.ne.s32.totalorder %s26, %s29
      %p38 = scmp.eq.s32.totalorder %s21, 1
      %p39 = por %p37, %p38
      %p40 = scmp.ne.s32.totalorder %s29, %s30
      %p41 = scmp.eq.s32.totalorder %s21, 0
      %p42 = por %p40, %p41
      %p43 = scmp.ne.s32.totalorder %s29, %s30
      %p44 = scmp.eq.s32.totalorder %s22, 1
      %p45 = por %p43, %p44
      %p47 = scmp.ne.s32.totalorder %s30, %s46
      %p48 = scmp.eq.s32.totalorder %s22, 0
      %p49 = por %p47, %p48
      %s51 = sadd.s32 %s50, 1
      %p54 = scmp.eq.s32.totalorder %s16, 1
      %p55 = scmp.ne.s32.totalorder %s50, %s52
      %p56 = scmp.eq.s32.totalorder %s16, 0
      %p57 = por %p55, %p56
      %p58 = scmp.ne.s32.totalorder %s50, %s52
      %p59 = scmp.eq.s32.totalorder %s21, 1
      %p60 = por %p58, %p59
      %p61 = scmp.ne.s32.totalorder %s52, %s53
      %p62 = scmp.eq.s32.totalorder %s21, 0
      %p63 = por %p61, %p62
      %p64 = scmp.ne.s32.totalorder %s52, %s53
      %p65 = scmp.eq.s32.totalorder %s22, 1
      %p66 = por %p64, %p65
      %p68 = scmp.ne.s32.totalorder %s53, %s67
      %p69 = scmp.eq.s32.totalorder %s22, 0
      %p70 = por %p68, %p69
      %s72 = sadd.s32 %s71, 1
      %p75 = scmp.eq.s32.totalorder %s16, 1
      %p76 = scmp.ne.s32.totalorder %s71, %s73
      %p77 = scmp.eq.s32.totalorder %s16, 0
      %p78 = por %p76, %p77
      %p79 = scmp.ne.s32.totalorder %s71, %s73
      %p80 = scmp.eq.s32.totalorder %s21, 1
      %p81 = por %p79, %p80
      %p82 = scmp.ne.s32.totalorder %s73, %s74
      %p83 = scmp.eq.s32.totalorder %s21, 0
      %p84 = por %p82, %p83
      %p85 = scmp.ne.s32.totalorder %s73, %s74
      %p86 = scmp.eq.s32.totalorder %s22, 1
      %p87 = por %p85, %p86
      %p89 = scmp.ne.s32.totalorder %s74, %s88
      %p90 = scmp.eq.s32.totalorder %s22, 0
      %p91 = por %p89, %p90
      %s92 = ssub.s32 %s16, %s23
      %p93 = scmp.eq.s32.totalorder %s92, 0
      %s95 = sadd.s32 %s94, 1
      %s96 = scalar_select %p93, %s94, %s95
      %p99 = pneg %p93
      %p100 = scmp.eq.s32.totalorder %s16, 1
      %p101 = por %p99, %p100
      %p102 = scmp.ne.s32.totalorder %s94, %s97
      %p103 = scmp.eq.s32.totalorder %s16, 0
      %p104 = por %p102, %p103
      %p105 = scmp.ne.s32.totalorder %s94, %s97
      %p106 = scmp.eq.s32.totalorder %s21, 1
      %p107 = por %p105, %p106
      %p108 = scmp.ne.s32.totalorder %s97, %s98
      %p109 = scmp.eq.s32.totalorder %s21, 0
      %p110 = por %p108, %p109
      %p111 = scmp.ne.s32.totalorder %s97, %s98
      %p112 = scmp.eq.s32.totalorder %s22, 1
      %p113 = por %p111, %p112
      %p115 = scmp.ne.s32.totalorder %s98, %s114
      %p116 = scmp.eq.s32.totalorder %s22, 0
      %p117 = por %p115, %p116
      %p118 = scmp.le.s32.totalorder 1, %s16
      %p119 = scmp.lt.s32.totalorder %s16, 3
      %p120 = pnand %p118, %p119
      %p121 = pneg %p120
      // Predicated region
      $region9: #{tpu_custom_call.1} parent=5 // pred_check
        _
      $region10: #{tpu_custom_call.1} parent=5 // pred_check_branch
        %123 = sbr.rel (%p120) target = $region12
      $region11: #{tpu_custom_call.1} parent=5 // pred_region
        %s124 = ssub.s32 %s16, 1
        // Predicated region
        $region13: #{tpu_custom_call.1} parent=11 // pred_check
          %p125 = pneg %p63
        $region14: #{tpu_custom_call.1} parent=11 // pred_check_branch
          %127 = sbr.rel (%p125) target = $region16
        $region15: #{tpu_custom_call.1} parent=11 // pred_region
          %s129 = ssub.s32 9216, 9216
          %130 = vsyncadd [#allocation6], %s129
          %s131 = sshll.u32 [#allocation5], 4
          %s132 = int_to_ptr.vmem [resolvable:$true] %s131
          %137 = dma.hbm_to_vmem [thread:$0]  %s1, 9216, %s132, [#allocation6], 576, 576, 36
        $region16: #{tpu_custom_call.1} parent=11 // pred_fallthru
          _
        // Predicated region
        $region17: #{tpu_custom_call.1} parent=11 // pred_check
          %p138 = pneg %p84
        $region18: #{tpu_custom_call.1} parent=11 // pred_check_branch
          %140 = sbr.rel (%p138) target = $region20
        $region19: #{tpu_custom_call.1} parent=11 // pred_region
          %s142 = ssub.s32 64, 64
          %143 = vsyncadd [#allocation6], %s142
          %s145 = sshll.u32 [#allocation7], 4
          %s146 = int_to_ptr.vmem [resolvable:$true] %s145
          %148 = dma.hbm_to_vmem [thread:$0]  %s2, 64, %s146, [#allocation6]
        $region20: #{tpu_custom_call.1} parent=11 // pred_fallthru
          _
      $region12: #{tpu_custom_call.1} parent=5 // pred_fallthru
        _
      %p149 = scmp.lt.s32.totalorder %s16, 2
      // Predicated region
      $region21: #{tpu_custom_call.1} parent=5 // pred_check
        %p150 = pneg %p149
      $region22: #{tpu_custom_call.1} parent=5 // pred_check_branch
        %152 = sbr.rel (%p150) target = $region24
      $region23: #{tpu_custom_call.1} parent=5 // pred_region
        // Predicated region
        $region25: #{tpu_custom_call.1} parent=23 // pred_check
          %p153 = pneg %p36
        $region26: #{tpu_custom_call.1} parent=23 // pred_check_branch
          %155 = sbr.rel (%p153) target = $region28
        $region27: #{tpu_custom_call.1} parent=23 // pred_region
          %s156 = sand.u32 %s26, 1
          %s157 = scalar_lea.sflag [#allocation3], %s156
          %s158 = sand.u32 %s26, 1
          %s159 = smul.addr %s158, 128
          %s160 = scalar_lea.vmem [#allocation2], %s159
          %s161 = smul.u32 8, %s16
          %s163 = ssub.s32 2048, 2048
          %164 = vsyncadd %s157, %s163
          %s165 = smul.addr %s161, 2
          %s166 = smul.addr %s165, 128
          %s167 = scalar_lea.hbm %s0, %s166
          %s168 = sshll.u32 %s160, 4
          %s169 = int_to_ptr.vmem [resolvable:$true] %s168
          %174 = dma.hbm_to_vmem [thread:$0]  %s167, 2048, %s169, %s157, 128, 128, 8
        $region28: #{tpu_custom_call.1} parent=23 // pred_fallthru
          _
      $region24: #{tpu_custom_call.1} parent=5 // pred_fallthru
        _
      %p175 = scmp.le.s32.totalorder 1, %s16
      %p176 = scmp.lt.s32.totalorder %s16, 3
      %p177 = pnand %p175, %p176
      %p178 = pneg %p177
      // Predicated region
      $region29: #{tpu_custom_call.1} parent=5 // pred_check
        _
      $region30: #{tpu_custom_call.1} parent=5 // pred_check_branch
        %180 = sbr.rel (%p177) target = $region32
      $region31: #{tpu_custom_call.1} parent=5 // pred_region
        %s181 = ssub.s32 %s16, 1
        %s182 = sand.u32 %s29, 1
        %s183 = scalar_lea.sflag [#allocation3], %s182
        %s184 = sand.u32 %s29, 1
        %s185 = smul.addr %s184, 128
        %s186 = scalar_lea.vmem [#allocation2], %s185
        // Predicated region
        $region33: #{tpu_custom_call.1} parent=31 // pred_check
          %p187 = pneg %p42
        $region34: #{tpu_custom_call.1} parent=31 // pred_check_branch
          %189 = sbr.rel (%p187) target = $region36
        $region35: #{tpu_custom_call.1} parent=31 // pred_region
          %190 = dma.done %s183, 2048
        $region36: #{tpu_custom_call.1} parent=31 // pred_fallthru
          _
        // Predicated region
        $region37: #{tpu_custom_call.1} parent=31 // pred_check
          %p191 = pneg %p63
        $region38: #{tpu_custom_call.1} parent=31 // pred_check_branch
          %193 = sbr.rel (%p191) target = $region40
        $region39: #{tpu_custom_call.1} parent=31 // pred_region
          %194 = dma.done [#allocation6], 9216
        $region40: #{tpu_custom_call.1} parent=31 // pred_fallthru
          _
        // Predicated region
        $region41: #{tpu_custom_call.1} parent=31 // pred_check
          %p195 = pneg %p84
        $region42: #{tpu_custom_call.1} parent=31 // pred_check_branch
          %197 = sbr.rel (%p195) target = $region44
        $region43: #{tpu_custom_call.1} parent=31 // pred_region
          %198 = dma.done [#allocation6], 64
        $region44: #{tpu_custom_call.1} parent=31 // pred_fallthru
          _
        %s199 = sand.u32 %s29, 1
        %s200 = scalar_lea.sflag [#allocation3], %s199
        %s201 = sand.u32 %s29, 1
        %s202 = smul.addr %s201, 128
        %s203 = scalar_lea.vmem [#allocation2], %s202
        %p204 = pneg %p42
        %p205 = pneg %p39
        %p206 = pneg %p63
        %p207 = pneg %p60
        %p208 = pneg %p84
        %p209 = pneg %p81
        %p210 = pneg %p110
        %p211 = pneg %p107
        %s212 = sand.u32 %s97, 1
        %s213 = scalar_lea.sflag [#allocation4], %s212
        %s214 = sand.u32 %s97, 1
        %s215 = smul.addr %s214, 24
        %s216 = scalar_lea.vmem [#allocation8], %s215
        %s217 = smul.u32 8, %s21
        %v219 = vld [vmem:[#allocation7] sm:$0x7]
        %v220 = vld [vmem:[%s186] sm:$0xff]
        %v221 = vld [vmem:[%s186 + $0x8] sm:$0xff]
        %v222 = vld [vmem:[%s186 + $0x10] sm:$0xff]
        %v223 = vld [vmem:[%s186 + $0x18] sm:$0xff]
        %v224 = vld [vmem:[%s186 + $0x20] sm:$0xff]
        %v225 = vld [vmem:[%s186 + $0x28] sm:$0xff]
        %v226 = vld [vmem:[%s186 + $0x30] sm:$0xff]
        %v227 = vld [vmem:[%s186 + $0x38] sm:$0xff]
        %v228 = vld [vmem:[%s186 + $0x40] sm:$0xff]
        %v229 = vld [vmem:[%s186 + $0x48] sm:$0xff]
        %v230 = vld [vmem:[%s186 + $0x50] sm:$0xff]
        %v231 = vld [vmem:[%s186 + $0x58] sm:$0xff]
        %v232 = vld [vmem:[%s186 + $0x60] sm:$0xff]
        %v233 = vld [vmem:[%s186 + $0x68] sm:$0xff]
        %v234 = vld [vmem:[%s186 + $0x70] sm:$0xff]
        %v235 = vld [vmem:[%s186 + $0x78] sm:$0xff]
        %v236 = vpack.c.bf16 %v221, %v220
        %v237 = vpack.c.bf16 %v223, %v222
        %v238 = vpack.c.bf16 %v225, %v224
        %v239 = vpack.c.bf16 %v227, %v226
        %v240 = vpack.c.bf16 %v229, %v228
        %v241 = vpack.c.bf16 %v231, %v230
        %v242 = vpack.c.bf16 %v233, %v232
        %v243 = vpack.c.bf16 %v235, %v234
        %v244 = vld [vmem:[#allocation5] sm:$0xff]
        %v245 = vld [vmem:[#allocation5 + $0x8] sm:$0xff]
        %v246 = vld [vmem:[#allocation5 + $0x10] sm:$0xff]
        %v247 = vld [vmem:[#allocation5 + $0x18] sm:$0xff]
        %v248 = vld [vmem:[#allocation5 + $0x20] sm:$0xf]
        %v249 = vld [vmem:[#allocation5 + $0x24] sm:$0xff]
        %v250 = vld [vmem:[#allocation5 + $0x2c] sm:$0xff]
        %v251 = vld [vmem:[#allocation5 + $0x34] sm:$0xff]
        %v252 = vld [vmem:[#allocation5 + $0x3c] sm:$0xff]
        %v253 = vld [vmem:[#allocation5 + $0x44] sm:$0xf]
        %v254 = vld [vmem:[#allocation5 + $0x48] sm:$0xff]
        %v255 = vld [vmem:[#allocation5 + $0x50] sm:$0xff]
        %v256 = vld [vmem:[#allocation5 + $0x58] sm:$0xff]
        %v257 = vld [vmem:[#allocation5 + $0x60] sm:$0xff]
        %v258 = vld [vmem:[#allocation5 + $0x68] sm:$0xf]
        %v259 = vld [vmem:[#allocation5 + $0x6c] sm:$0xff]
        %v260 = vld [vmem:[#allocation5 + $0x74] sm:$0xff]
        %v261 = vld [vmem:[#allocation5 + $0x7c] sm:$0xff]
        %v262 = vld [vmem:[#allocation5 + $0x84] sm:$0xff]
        %v263 = vld [vmem:[#allocation5 + $0x8c] sm:$0xf]
        %v264 = vld [vmem:[#allocation5 + $0x90] sm:$0xff]
        %v265 = vld [vmem:[#allocation5 + $0x98] sm:$0xff]
        %v266 = vld [vmem:[#allocation5 + $0xa0] sm:$0xff]
        %v267 = vld [vmem:[#allocation5 + $0xa8] sm:$0xff]
        %v268 = vld [vmem:[#allocation5 + $0xb0] sm:$0xf]
        %v269 = vld [vmem:[#allocation5 + $0xb4] sm:$0xff]
        %v270 = vld [vmem:[#allocation5 + $0xbc] sm:$0xff]
        %v271 = vld [vmem:[#allocation5 + $0xc4] sm:$0xff]
        %v272 = vld [vmem:[#allocation5 + $0xcc] sm:$0xff]
        %v273 = vld [vmem:[#allocation5 + $0xd4] sm:$0xf]
        %v274 = vld [vmem:[#allocation5 + $0xd8] sm:$0xff]
        %v275 = vld [vmem:[#allocation5 + $0xe0] sm:$0xff]
        %v276 = vld [vmem:[#allocation5 + $0xe8] sm:$0xff]
        %v277 = vld [vmem:[#allocation5 + $0xf0] sm:$0xff]
        %v278 = vld [vmem:[#allocation5 + $0xf8] sm:$0xf]
        %v279 = vld [vmem:[#allocation5 + $0xfc] sm:$0xff]
        %v280 = vld [vmem:[#allocation5 + $0x104] sm:$0xff]
        %v281 = vld [vmem:[#allocation5 + $0x10c] sm:$0xff]
        %v282 = vld [vmem:[#allocation5 + $0x114] sm:$0xff]
        %v283 = vld [vmem:[#allocation5 + $0x11c] sm:$0xf]
        %v284 = vld [vmem:[#allocation5 + $0x120] sm:$0xff]
        %v285 = vld [vmem:[#allocation5 + $0x128] sm:$0xff]
        %v286 = vld [vmem:[#allocation5 + $0x130] sm:$0xff]
        %v287 = vld [vmem:[#allocation5 + $0x138] sm:$0xff]
        %v288 = vld [vmem:[#allocation5 + $0x140] sm:$0xf]
        %v289 = vld [vmem:[#allocation5 + $0x144] sm:$0xff]
        %v290 = vld [vmem:[#allocation5 + $0x14c] sm:$0xff]
        %v291 = vld [vmem:[#allocation5 + $0x154] sm:$0xff]
        %v292 = vld [vmem:[#allocation5 + $0x15c] sm:$0xff]
        %v293 = vld [vmem:[#allocation5 + $0x164] sm:$0xf]
        %v294 = vld [vmem:[#allocation5 + $0x168] sm:$0xff]
        %v295 = vld [vmem:[#allocation5 + $0x170] sm:$0xff]
        %v296 = vld [vmem:[#allocation5 + $0x178] sm:$0xff]
        %v297 = vld [vmem:[#allocation5 + $0x180] sm:$0xff]
        %v298 = vld [vmem:[#allocation5 + $0x188] sm:$0xf]
        %v299 = vld [vmem:[#allocation5 + $0x18c] sm:$0xff]
        %v300 = vld [vmem:[#allocation5 + $0x194] sm:$0xff]
        %v301 = vld [vmem:[#allocation5 + $0x19c] sm:$0xff]
        %v302 = vld [vmem:[#allocation5 + $0x1a4] sm:$0xff]
        %v303 = vld [vmem:[#allocation5 + $0x1ac] sm:$0xf]
        %v304 = vld [vmem:[#allocation5 + $0x1b0] sm:$0xff]
        %v305 = vld [vmem:[#allocation5 + $0x1b8] sm:$0xff]
        %v306 = vld [vmem:[#allocation5 + $0x1c0] sm:$0xff]
        %v307 = vld [vmem:[#allocation5 + $0x1c8] sm:$0xff]
        %v308 = vld [vmem:[#allocation5 + $0x1d0] sm:$0xf]
        %v309 = vld [vmem:[#allocation5 + $0x1d4] sm:$0xff]
        %v310 = vld [vmem:[#allocation5 + $0x1dc] sm:$0xff]
        %v311 = vld [vmem:[#allocation5 + $0x1e4] sm:$0xff]
        %v312 = vld [vmem:[#allocation5 + $0x1ec] sm:$0xff]
        %v313 = vld [vmem:[#allocation5 + $0x1f4] sm:$0xf]
        %v314 = vld [vmem:[#allocation5 + $0x1f8] sm:$0xff]
        %v315 = vld [vmem:[#allocation5 + $0x200] sm:$0xff]
        %v316 = vld [vmem:[#allocation5 + $0x208] sm:$0xff]
        %v317 = vld [vmem:[#allocation5 + $0x210] sm:$0xff]
        %v318 = vld [vmem:[#allocation5 + $0x218] sm:$0xf]
        %v319 = vld [vmem:[#allocation5 + $0x21c] sm:$0xff]
        %v320 = vld [vmem:[#allocation5 + $0x224] sm:$0xff]
        %v321 = vld [vmem:[#allocation5 + $0x22c] sm:$0xff]
        %v322 = vld [vmem:[#allocation5 + $0x234] sm:$0xff]
        %v323 = vld [vmem:[#allocation5 + $0x23c] sm:$0xf]
        %v404 = vunpack.c.l.b16 %v244
        %v405 = vunpack.c.h.b16 %v244
        %v406 = vunpack.c.l.b16 %v245
        %v407 = vunpack.c.h.b16 %v245
        %v408 = vunpack.c.l.b16 %v246
        %v409 = vunpack.c.h.b16 %v246
        %v410 = vunpack.c.l.b16 %v247
        %v411 = vunpack.c.h.b16 %v247
        %v412 = vunpack.c.l.b16 %v248
        %v413 = vunpack.c.l.b16 %v249
        %v414 = vunpack.c.h.b16 %v249
        %v415 = vunpack.c.l.b16 %v250
        %v416 = vunpack.c.h.b16 %v250
        %v417 = vunpack.c.l.b16 %v251
        %v418 = vunpack.c.h.b16 %v251
        %v419 = vunpack.c.l.b16 %v252
        %v420 = vunpack.c.h.b16 %v252
        %v421 = vunpack.c.l.b16 %v253
        %v422 = vunpack.c.l.b16 %v254
        %v423 = vunpack.c.h.b16 %v254
        %v424 = vunpack.c.l.b16 %v255
        %v425 = vunpack.c.h.b16 %v255
        %v426 = vunpack.c.l.b16 %v256
        %v427 = vunpack.c.h.b16 %v256
        %v428 = vunpack.c.l.b16 %v257
        %v429 = vunpack.c.h.b16 %v257
        %v430 = vunpack.c.l.b16 %v258
        %v431 = vunpack.c.l.b16 %v259
        %v432 = vunpack.c.h.b16 %v259
        %v433 = vunpack.c.l.b16 %v260
        %v434 = vunpack.c.h.b16 %v260
        %v435 = vunpack.c.l.b16 %v261
        %v436 = vunpack.c.h.b16 %v261
        %v437 = vunpack.c.l.b16 %v262
        %v438 = vunpack.c.h.b16 %v262
        %v439 = vunpack.c.l.b16 %v263
        %v440 = vunpack.c.l.b16 %v264
        %v441 = vunpack.c.h.b16 %v264
        %v442 = vunpack.c.l.b16 %v265
        %v443 = vunpack.c.h.b16 %v265
        %v444 = vunpack.c.l.b16 %v266
        %v445 = vunpack.c.h.b16 %v266
        %v446 = vunpack.c.l.b16 %v267
        %v447 = vunpack.c.h.b16 %v267
        %v448 = vunpack.c.l.b16 %v268
        %v449 = vunpack.c.l.b16 %v269
        %v450 = vunpack.c.h.b16 %v269
        %v451 = vunpack.c.l.b16 %v270
        %v452 = vunpack.c.h.b16 %v270
        %v453 = vunpack.c.l.b16 %v271
        %v454 = vunpack.c.h.b16 %v271
        %v455 = vunpack.c.l.b16 %v272
        %v456 = vunpack.c.h.b16 %v272
        %v457 = vunpack.c.l.b16 %v273
        %v458 = vunpack.c.l.b16 %v274
        %v459 = vunpack.c.h.b16 %v274
        %v460 = vunpack.c.l.b16 %v275
        %v461 = vunpack.c.h.b16 %v275
        %v462 = vunpack.c.l.b16 %v276
        %v463 = vunpack.c.h.b16 %v276
        %v464 = vunpack.c.l.b16 %v277
        %v465 = vunpack.c.h.b16 %v277
        %v466 = vunpack.c.l.b16 %v278
        %v467 = vunpack.c.l.b16 %v279
        %v468 = vunpack.c.h.b16 %v279
        %v469 = vunpack.c.l.b16 %v280
        %v470 = vunpack.c.h.b16 %v280
        %v471 = vunpack.c.l.b16 %v281
        %v472 = vunpack.c.h.b16 %v281
        %v473 = vunpack.c.l.b16 %v282
        %v474 = vunpack.c.h.b16 %v282
        %v475 = vunpack.c.l.b16 %v283
        %v476 = vunpack.c.l.b16 %v284
        %v477 = vunpack.c.h.b16 %v284
        %v478 = vunpack.c.l.b16 %v285
        %v479 = vunpack.c.h.b16 %v285
        %v480 = vunpack.c.l.b16 %v286
        %v481 = vunpack.c.h.b16 %v286
        %v482 = vunpack.c.l.b16 %v287
        %v483 = vunpack.c.h.b16 %v287
        %v484 = vunpack.c.l.b16 %v288
        %v485 = vunpack.c.l.b16 %v289
        %v486 = vunpack.c.h.b16 %v289
        %v487 = vunpack.c.l.b16 %v290
        %v488 = vunpack.c.h.b16 %v290
        %v489 = vunpack.c.l.b16 %v291
        %v490 = vunpack.c.h.b16 %v291
        %v491 = vunpack.c.l.b16 %v292
        %v492 = vunpack.c.h.b16 %v292
        %v493 = vunpack.c.l.b16 %v293
        %v494 = vunpack.c.l.b16 %v294
        %v495 = vunpack.c.h.b16 %v294
        %v496 = vunpack.c.l.b16 %v295
        %v497 = vunpack.c.h.b16 %v295
        %v498 = vunpack.c.l.b16 %v296
        %v499 = vunpack.c.h.b16 %v296
        %v500 = vunpack.c.l.b16 %v297
        %v501 = vunpack.c.h.b16 %v297
        %v502 = vunpack.c.l.b16 %v298
        %v503 = vunpack.c.l.b16 %v299
        %v504 = vunpack.c.h.b16 %v299
        %v505 = vunpack.c.l.b16 %v300
        %v506 = vunpack.c.h.b16 %v300
        %v507 = vunpack.c.l.b16 %v301
        %v508 = vunpack.c.h.b16 %v301
        %v509 = vunpack.c.l.b16 %v302
        %v510 = vunpack.c.h.b16 %v302
        %v511 = vunpack.c.l.b16 %v303
        %v512 = vunpack.c.l.b16 %v304
        %v513 = vunpack.c.h.b16 %v304
        %v514 = vunpack.c.l.b16 %v305
        %v515 = vunpack.c.h.b16 %v305
        %v516 = vunpack.c.l.b16 %v306
        %v517 = vunpack.c.h.b16 %v306
        %v518 = vunpack.c.l.b16 %v307
        %v519 = vunpack.c.h.b16 %v307
        %v520 = vunpack.c.l.b16 %v308
        %v521 = vunpack.c.l.b16 %v309
        %v522 = vunpack.c.h.b16 %v309
        %v523 = vunpack.c.l.b16 %v310
        %v524 = vunpack.c.h.b16 %v310
        %v525 = vunpack.c.l.b16 %v311
        %v526 = vunpack.c.h.b16 %v311
        %v527 = vunpack.c.l.b16 %v312
        %v528 = vunpack.c.h.b16 %v312
        %v529 = vunpack.c.l.b16 %v313
        %v530 = vunpack.c.l.b16 %v314
        %v531 = vunpack.c.h.b16 %v314
        %v532 = vunpack.c.l.b16 %v315
        %v533 = vunpack.c.h.b16 %v315
        %v534 = vunpack.c.l.b16 %v316
        %v535 = vunpack.c.h.b16 %v316
        %v536 = vunpack.c.l.b16 %v317
        %v537 = vunpack.c.h.b16 %v317
        %v538 = vunpack.c.l.b16 %v318
        %v539 = vunpack.c.l.b16 %v319
        %v540 = vunpack.c.h.b16 %v319
        %v541 = vunpack.c.l.b16 %v320
        %v542 = vunpack.c.h.b16 %v320
        %v543 = vunpack.c.l.b16 %v321
        %v544 = vunpack.c.h.b16 %v321
        %v545 = vunpack.c.l.b16 %v322
        %v546 = vunpack.c.h.b16 %v322
        %v547 = vunpack.c.l.b16 %v323
        %v548 = vpack.c.b16 %v413, %v404
        %v549 = vpack.c.b16 %v414, %v405
        %v550 = vpack.c.b16 %v415, %v406
        %v551 = vpack.c.b16 %v416, %v407
        %v552 = vpack.c.b16 %v417, %v408
        %v553 = vpack.c.b16 %v418, %v409
        %v554 = vpack.c.b16 %v419, %v410
        %v555 = vpack.c.b16 %v420, %v411
        %v556 = vpack.c.b16 %v421, %v412
        %v557 = vpack.c.b16 %v431, %v422
        %v558 = vpack.c.b16 %v432, %v423
        %v559 = vpack.c.b16 %v433, %v424
        %v560 = vpack.c.b16 %v434, %v425
        %v561 = vpack.c.b16 %v435, %v426
        %v562 = vpack.c.b16 %v436, %v427
        %v563 = vpack.c.b16 %v437, %v428
        %v564 = vpack.c.b16 %v438, %v429
        %v565 = vpack.c.b16 %v439, %v430
        %v566 = vpack.c.b16 %v449, %v440
        %v567 = vpack.c.b16 %v450, %v441
        %v568 = vpack.c.b16 %v451, %v442
        %v569 = vpack.c.b16 %v452, %v443
        %v570 = vpack.c.b16 %v453, %v444
        %v571 = vpack.c.b16 %v454, %v445
        %v572 = vpack.c.b16 %v455, %v446
        %v573 = vpack.c.b16 %v456, %v447
        %v574 = vpack.c.b16 %v457, %v448
        %v575 = vpack.c.b16 %v467, %v458
        %v576 = vpack.c.b16 %v468, %v459
        %v577 = vpack.c.b16 %v469, %v460
        %v578 = vpack.c.b16 %v470, %v461
        %v579 = vpack.c.b16 %v471, %v462
        %v580 = vpack.c.b16 %v472, %v463
        %v581 = vpack.c.b16 %v473, %v464
        %v582 = vpack.c.b16 %v474, %v465
        %v583 = vpack.c.b16 %v475, %v466
        %v584 = vpack.c.b16 %v485, %v476
        %v585 = vpack.c.b16 %v486, %v477
        %v586 = vpack.c.b16 %v487, %v478
        %v587 = vpack.c.b16 %v488, %v479
        %v588 = vpack.c.b16 %v489, %v480
        %v589 = vpack.c.b16 %v490, %v481
        %v590 = vpack.c.b16 %v491, %v482
        %v591 = vpack.c.b16 %v492, %v483
        %v592 = vpack.c.b16 %v493, %v484
        %v593 = vpack.c.b16 %v503, %v494
        %v594 = vpack.c.b16 %v504, %v495
        %v595 = vpack.c.b16 %v505, %v496
        %v596 = vpack.c.b16 %v506, %v497
        %v597 = vpack.c.b16 %v507, %v498
        %v598 = vpack.c.b16 %v508, %v499
        %v599 = vpack.c.b16 %v509, %v500
        %v600 = vpack.c.b16 %v510, %v501
        %v601 = vpack.c.b16 %v511, %v502
        %v602 = vpack.c.b16 %v521, %v512
        %v603 = vpack.c.b16 %v522, %v513
        %v604 = vpack.c.b16 %v523, %v514
        %v605 = vpack.c.b16 %v524, %v515
        %v606 = vpack.c.b16 %v525, %v516
        %v607 = vpack.c.b16 %v526, %v517
        %v608 = vpack.c.b16 %v527, %v518
        %v609 = vpack.c.b16 %v528, %v519
        %v610 = vpack.c.b16 %v529, %v520
        %v611 = vpack.c.b16 %v539, %v530
        %v612 = vpack.c.b16 %v540, %v531
        %v613 = vpack.c.b16 %v541, %v532
        %v614 = vpack.c.b16 %v542, %v533
        %v615 = vpack.c.b16 %v543, %v534
        %v616 = vpack.c.b16 %v544, %v535
        %v617 = vpack.c.b16 %v545, %v536
        %v618 = vpack.c.b16 %v546, %v537
        %v619 = vpack.c.b16 %v547, %v538
        %692 = vmatprep.subr.bf16.mxu0 %v612
        %693 = vmatpush1.bf16.msra.mxu0 %v611
        %694 = vmatprep.subr.bf16.mxu0 %v603
        %695 = vmatpush1.bf16.msra.mxu0 %v602
        %696 = vmatprep.subr.bf16.mxu0 %v594
        %697 = vmatpush1.bf16.msra.mxu0 %v593
        %698 = vmatprep.subr.bf16.mxu0 %v585
        %699 = vmatpush1.bf16.msra.mxu0 %v584
        %700 = vmatprep.subr.bf16.mxu0 %v576
        %701 = vmatpush1.bf16.msra.mxu0 %v575
        %702 = vmatprep.subr.bf16.mxu0 %v567
        %703 = vmatpush1.bf16.msra.mxu0 %v566
        %704 = vmatprep.subr.bf16.mxu0 %v558
        %705 = vmatpush1.bf16.msra.mxu0 %v557
        %706 = vmatprep.subr.bf16.mxu0 %v549
        %707 = vmatpush1.bf16.msra.mxu0 %v548
        %708 = vmatprep.subr.bf16.mxu0 0
        %709 = vmatpush2.bf16.msra.mxu0 0
        %710 = vmatprep.subr.bf16.mxu0 0
        %711 = vmatpush2.bf16.msra.mxu0 0
        %712 = vmatprep.subr.bf16.mxu0 0
        %713 = vmatpush2.bf16.msra.mxu0 0
        %714 = vmatprep.subr.bf16.mxu0 0
        %715 = vmatpush2.bf16.msra.mxu0 0
        %716 = vmatprep.subr.bf16.mxu0 0
        %717 = vmatpush2.bf16.msra.mxu0 0
        %718 = vmatprep.subr.bf16.mxu0 0
        %719 = vmatpush2.bf16.msra.mxu0 0
        %720 = vmatprep.subr.bf16.mxu0 0
        %721 = vmatpush2.bf16.msra.mxu0 0
        %722 = vmatprep.subr.bf16.mxu0 0
        %723 = vmatpush2.bf16.msra.mxu0 0
        %724 = vmatprep.mubr.bf16.mxu0 0
        %725 = vmatmul.mubr.bf16.gmra.mxu0 %v236
        %v726 = vpop.f32.mrf.mxu0
        %v727 = vadd.f32 0.0, %v726
        %v728 = vpop.f32.mrf.mxu0
        %v729 = vadd.f32 0.0, %v728
        %v730 = vpop.f32.mrf.mxu0
        %v731 = vadd.f32 0.0, %v730
        %v732 = vpop.f32.mrf.mxu0
        %v733 = vadd.f32 0.0, %v732
        %734 = vmatprep.mubr.bf16.mxu0 0
        %735 = vmatmul.mubr.bf16.gmra.mxu0 %v237
        %v736 = vpop.f32.mrf.mxu0
        %v737 = vadd.f32 0.0, %v736
        %v738 = vpop.f32.mrf.mxu0
        %v739 = vadd.f32 0.0, %v738
        %v740 = vpop.f32.mrf.mxu0
        %v741 = vadd.f32 0.0, %v740
        %v742 = vpop.f32.mrf.mxu0
        %v743 = vadd.f32 0.0, %v742
        %744 = vmatprep.mubr.bf16.mxu0 0
        %745 = vmatmul.mubr.bf16.gmra.mxu0 %v238
        %v746 = vpop.f32.mrf.mxu0
        %v747 = vadd.f32 0.0, %v746
        %v748 = vpop.f32.mrf.mxu0
        %v749 = vadd.f32 0.0, %v748
        %v750 = vpop.f32.mrf.mxu0
        %v751 = vadd.f32 0.0, %v750
        %v752 = vpop.f32.mrf.mxu0
        %v753 = vadd.f32 0.0, %v752
        %754 = vmatprep.mubr.bf16.mxu0 0
        %755 = vmatmul.mubr.bf16.gmra.mxu0 %v239
        %v756 = vpop.f32.mrf.mxu0
        %v757 = vadd.f32 0.0, %v756
        %v758 = vpop.f32.mrf.mxu0
        %v759 = vadd.f32 0.0, %v758
        %v760 = vpop.f32.mrf.mxu0
        %v761 = vadd.f32 0.0, %v760
        %v762 = vpop.f32.mrf.mxu0
        %v763 = vadd.f32 0.0, %v762
        %764 = vmatprep.mubr.bf16.mxu0 0
        %765 = vmatmul.mubr.bf16.gmra.mxu0 %v240
        %v766 = vpop.f32.mrf.mxu0
        %v767 = vadd.f32 0.0, %v766
        %v768 = vpop.f32.mrf.mxu0
        %v769 = vadd.f32 0.0, %v768
        %v770 = vpop.f32.mrf.mxu0
        %v771 = vadd.f32 0.0, %v770
        %v772 = vpop.f32.mrf.mxu0
        %v773 = vadd.f32 0.0, %v772
        %774 = vmatprep.mubr.bf16.mxu0 0
        %775 = vmatmul.mubr.bf16.gmra.mxu0 %v241
        %v776 = vpop.f32.mrf.mxu0
        %v777 = vadd.f32 0.0, %v776
        %v778 = vpop.f32.mrf.mxu0
        %v779 = vadd.f32 0.0, %v778
        %v780 = vpop.f32.mrf.mxu0
        %v781 = vadd.f32 0.0, %v780
        %v782 = vpop.f32.mrf.mxu0
        %v783 = vadd.f32 0.0, %v782
        %784 = vmatprep.mubr.bf16.mxu0 0
        %785 = vmatmul.mubr.bf16.gmra.mxu0 %v242
        %v786 = vpop.f32.mrf.mxu0
        %v787 = vadd.f32 0.0, %v786
        %v788 = vpop.f32.mrf.mxu0
        %v789 = vadd.f32 0.0, %v788
        %v790 = vpop.f32.mrf.mxu0
        %v791 = vadd.f32 0.0, %v790
        %v792 = vpop.f32.mrf.mxu0
        %v793 = vadd.f32 0.0, %v792
        %794 = vmatprep.mubr.bf16.mxu0 0
        %795 = vmatmul.mubr.bf16.gmra.mxu0 %v243
        %v796 = vpop.f32.mrf.mxu0
        %v797 = vadd.f32 0.0, %v796
        %v798 = vpop.f32.mrf.mxu0
        %v799 = vadd.f32 0.0, %v798
        %v800 = vpop.f32.mrf.mxu0
        %v801 = vadd.f32 0.0, %v800
        %v802 = vpop.f32.mrf.mxu0
        %v803 = vadd.f32 0.0, %v802
        %804 = vdwg.mxu0
        %805 = vmatprep.subr.bf16.mxu0 %v614
        %806 = vmatpush1.bf16.msra.mxu0 %v613
        %807 = vmatprep.subr.bf16.mxu0 %v605
        %808 = vmatpush1.bf16.msra.mxu0 %v604
        %809 = vmatprep.subr.bf16.mxu0 %v596
        %810 = vmatpush1.bf16.msra.mxu0 %v595
        %811 = vmatprep.subr.bf16.mxu0 %v587
        %812 = vmatpush1.bf16.msra.mxu0 %v586
        %813 = vmatprep.subr.bf16.mxu0 %v578
        %814 = vmatpush1.bf16.msra.mxu0 %v577
        %815 = vmatprep.subr.bf16.mxu0 %v569
        %816 = vmatpush1.bf16.msra.mxu0 %v568
        %817 = vmatprep.subr.bf16.mxu0 %v560
        %818 = vmatpush1.bf16.msra.mxu0 %v559
        %819 = vmatprep.subr.bf16.mxu0 %v551
        %820 = vmatpush1.bf16.msra.mxu0 %v550
        %821 = vmatprep.subr.bf16.mxu0 0
        %822 = vmatpush2.bf16.msra.mxu0 0
        %823 = vmatprep.subr.bf16.mxu0 0
        %824 = vmatpush2.bf16.msra.mxu0 0
        %825 = vmatprep.subr.bf16.mxu0 0
        %826 = vmatpush2.bf16.msra.mxu0 0
        %827 = vmatprep.subr.bf16.mxu0 0
        %828 = vmatpush2.bf16.msra.mxu0 0
        %829 = vmatprep.subr.bf16.mxu0 0
        %830 = vmatpush2.bf16.msra.mxu0 0
        %831 = vmatprep.subr.bf16.mxu0 0
        %832 = vmatpush2.bf16.msra.mxu0 0
        %833 = vmatprep.subr.bf16.mxu0 0
        %834 = vmatpush2.bf16.msra.mxu0 0
        %835 = vmatprep.subr.bf16.mxu0 0
        %836 = vmatpush2.bf16.msra.mxu0 0
        %837 = vmatprep.mubr.bf16.mxu0 0
        %838 = vmatmul.mubr.bf16.gmra.mxu0 %v236
        %v839 = vpop.f32.mrf.mxu0
        %v840 = vadd.f32 0.0, %v839
        %v841 = vpop.f32.mrf.mxu0
        %v842 = vadd.f32 0.0, %v841
        %v843 = vpop.f32.mrf.mxu0
        %v844 = vadd.f32 0.0, %v843
        %v845 = vpop.f32.mrf.mxu0
        %v846 = vadd.f32 0.0, %v845
        %847 = vmatprep.mubr.bf16.mxu0 0
        %848 = vmatmul.mubr.bf16.gmra.mxu0 %v237
        %v849 = vpop.f32.mrf.mxu0
        %v850 = vadd.f32 0.0, %v849
        %v851 = vpop.f32.mrf.mxu0
        %v852 = vadd.f32 0.0, %v851
        %v853 = vpop.f32.mrf.mxu0
        %v854 = vadd.f32 0.0, %v853
        %v855 = vpop.f32.mrf.mxu0
        %v856 = vadd.f32 0.0, %v855
        %857 = vmatprep.mubr.bf16.mxu0 0
        %858 = vmatmul.mubr.bf16.gmra.mxu0 %v238
        %v859 = vpop.f32.mrf.mxu0
        %v860 = vadd.f32 0.0, %v859
        %v861 = vpop.f32.mrf.mxu0
        %v862 = vadd.f32 0.0, %v861
        %v863 = vpop.f32.mrf.mxu0
        %v864 = vadd.f32 0.0, %v863
        %v865 = vpop.f32.mrf.mxu0
        %v866 = vadd.f32 0.0, %v865
        %867 = vmatprep.mubr.bf16.mxu0 0
        %868 = vmatmul.mubr.bf16.gmra.mxu0 %v239
        %v869 = vpop.f32.mrf.mxu0
        %v870 = vadd.f32 0.0, %v869
        %v871 = vpop.f32.mrf.mxu0
        %v872 = vadd.f32 0.0, %v871
        %v873 = vpop.f32.mrf.mxu0
        %v874 = vadd.f32 0.0, %v873
        %v875 = vpop.f32.mrf.mxu0
        %v876 = vadd.f32 0.0, %v875
        %877 = vmatprep.mubr.bf16.mxu0 0
        %878 = vmatmul.mubr.bf16.gmra.mxu0 %v240
        %v879 = vpop.f32.mrf.mxu0
        %v880 = vadd.f32 0.0, %v879
        %v881 = vpop.f32.mrf.mxu0
        %v882 = vadd.f32 0.0, %v881
        %v883 = vpop.f32.mrf.mxu0
        %v884 = vadd.f32 0.0, %v883
        %v885 = vpop.f32.mrf.mxu0
        %v886 = vadd.f32 0.0, %v885
        %887 = vmatprep.mubr.bf16.mxu0 0
        %888 = vmatmul.mubr.bf16.gmra.mxu0 %v241
        %v889 = vpop.f32.mrf.mxu0
        %v890 = vadd.f32 0.0, %v889
        %v891 = vpop.f32.mrf.mxu0
        %v892 = vadd.f32 0.0, %v891
        %v893 = vpop.f32.mrf.mxu0
        %v894 = vadd.f32 0.0, %v893
        %v895 = vpop.f32.mrf.mxu0
        %v896 = vadd.f32 0.0, %v895
        %897 = vmatprep.mubr.bf16.mxu0 0
        %898 = vmatmul.mubr.bf16.gmra.mxu0 %v242
        %v899 = vpop.f32.mrf.mxu0
        %v900 = vadd.f32 0.0, %v899
        %v901 = vpop.f32.mrf.mxu0
        %v902 = vadd.f32 0.0, %v901
        %v903 = vpop.f32.mrf.mxu0
        %v904 = vadd.f32 0.0, %v903
        %v905 = vpop.f32.mrf.mxu0
        %v906 = vadd.f32 0.0, %v905
        %907 = vmatprep.mubr.bf16.mxu0 0
        %908 = vmatmul.mubr.bf16.gmra.mxu0 %v243
        %v909 = vpop.f32.mrf.mxu0
        %v910 = vadd.f32 0.0, %v909
        %v911 = vpop.f32.mrf.mxu0
        %v912 = vadd.f32 0.0, %v911
        %v913 = vpop.f32.mrf.mxu0
        %v914 = vadd.f32 0.0, %v913
        %v915 = vpop.f32.mrf.mxu0
        %v916 = vadd.f32 0.0, %v915
        %917 = vdwg.mxu0
        %918 = vmatprep.subr.bf16.mxu0 %v616
        %919 = vmatpush1.bf16.msra.mxu0 %v615
        %920 = vmatprep.subr.bf16.mxu0 %v607
        %921 = vmatpush1.bf16.msra.mxu0 %v606
        %922 = vmatprep.subr.bf16.mxu0 %v598
        %923 = vmatpush1.bf16.msra.mxu0 %v597
        %924 = vmatprep.subr.bf16.mxu0 %v589
        %925 = vmatpush1.bf16.msra.mxu0 %v588
        %926 = vmatprep.subr.bf16.mxu0 %v580
        %927 = vmatpush1.bf16.msra.mxu0 %v579
        %928 = vmatprep.subr.bf16.mxu0 %v571
        %929 = vmatpush1.bf16.msra.mxu0 %v570
        %930 = vmatprep.subr.bf16.mxu0 %v562
        %931 = vmatpush1.bf16.msra.mxu0 %v561
        %932 = vmatprep.subr.bf16.mxu0 %v553
        %933 = vmatpush1.bf16.msra.mxu0 %v552
        %934 = vmatprep.subr.bf16.mxu0 0
        %935 = vmatpush2.bf16.msra.mxu0 0
        %936 = vmatprep.subr.bf16.mxu0 0
        %937 = vmatpush2.bf16.msra.mxu0 0
        %938 = vmatprep.subr.bf16.mxu0 0
        %939 = vmatpush2.bf16.msra.mxu0 0
        %940 = vmatprep.subr.bf16.mxu0 0
        %941 = vmatpush2.bf16.msra.mxu0 0
        %942 = vmatprep.subr.bf16.mxu0 0
        %943 = vmatpush2.bf16.msra.mxu0 0
        %944 = vmatprep.subr.bf16.mxu0 0
        %945 = vmatpush2.bf16.msra.mxu0 0
        %946 = vmatprep.subr.bf16.mxu0 0
        %947 = vmatpush2.bf16.msra.mxu0 0
        %948 = vmatprep.subr.bf16.mxu0 0
        %949 = vmatpush2.bf16.msra.mxu0 0
        %950 = vmatprep.mubr.bf16.mxu0 0
        %951 = vmatmul.mubr.bf16.gmra.mxu0 %v236
        %v952 = vpop.f32.mrf.mxu0
        %v953 = vadd.f32 0.0, %v952
        %v954 = vpop.f32.mrf.mxu0
        %v955 = vadd.f32 0.0, %v954
        %v956 = vpop.f32.mrf.mxu0
        %v957 = vadd.f32 0.0, %v956
        %v958 = vpop.f32.mrf.mxu0
        %v959 = vadd.f32 0.0, %v958
        %960 = vmatprep.mubr.bf16.mxu0 0
        %961 = vmatmul.mubr.bf16.gmra.mxu0 %v237
        %v962 = vpop.f32.mrf.mxu0
        %v963 = vadd.f32 0.0, %v962
        %v964 = vpop.f32.mrf.mxu0
        %v965 = vadd.f32 0.0, %v964
        %v966 = vpop.f32.mrf.mxu0
        %v967 = vadd.f32 0.0, %v966
        %v968 = vpop.f32.mrf.mxu0
        %v969 = vadd.f32 0.0, %v968
        %970 = vmatprep.mubr.bf16.mxu0 0
        %971 = vmatmul.mubr.bf16.gmra.mxu0 %v238
        %v972 = vpop.f32.mrf.mxu0
        %v973 = vadd.f32 0.0, %v972
        %v974 = vpop.f32.mrf.mxu0
        %v975 = vadd.f32 0.0, %v974
        %v976 = vpop.f32.mrf.mxu0
        %v977 = vadd.f32 0.0, %v976
        %v978 = vpop.f32.mrf.mxu0
        %v979 = vadd.f32 0.0, %v978
        %980 = vmatprep.mubr.bf16.mxu0 0
        %981 = vmatmul.mubr.bf16.gmra.mxu0 %v239
        %v982 = vpop.f32.mrf.mxu0
        %v983 = vadd.f32 0.0, %v982
        %v984 = vpop.f32.mrf.mxu0
        %v985 = vadd.f32 0.0, %v984
        %v986 = vpop.f32.mrf.mxu0
        %v987 = vadd.f32 0.0, %v986
        %v988 = vpop.f32.mrf.mxu0
        %v989 = vadd.f32 0.0, %v988
        %990 = vmatprep.mubr.bf16.mxu0 0
        %991 = vmatmul.mubr.bf16.gmra.mxu0 %v240
        %v992 = vpop.f32.mrf.mxu0
        %v993 = vadd.f32 0.0, %v992
        %v994 = vpop.f32.mrf.mxu0
        %v995 = vadd.f32 0.0, %v994
        %v996 = vpop.f32.mrf.mxu0
        %v997 = vadd.f32 0.0, %v996
        %v998 = vpop.f32.mrf.mxu0
        %v999 = vadd.f32 0.0, %v998
        %1000 = vmatprep.mubr.bf16.mxu0 0
        %1001 = vmatmul.mubr.bf16.gmra.mxu0 %v241
        %v1002 = vpop.f32.mrf.mxu0
        %v1003 = vadd.f32 0.0, %v1002
        %v1004 = vpop.f32.mrf.mxu0
        %v1005 = vadd.f32 0.0, %v1004
        %v1006 = vpop.f32.mrf.mxu0
        %v1007 = vadd.f32 0.0, %v1006
        %v1008 = vpop.f32.mrf.mxu0
        %v1009 = vadd.f32 0.0, %v1008
        %1010 = vmatprep.mubr.bf16.mxu0 0
        %1011 = vmatmul.mubr.bf16.gmra.mxu0 %v242
        %v1012 = vpop.f32.mrf.mxu0
        %v1013 = vadd.f32 0.0, %v1012
        %v1014 = vpop.f32.mrf.mxu0
        %v1015 = vadd.f32 0.0, %v1014
        %v1016 = vpop.f32.mrf.mxu0
        %v1017 = vadd.f32 0.0, %v1016
        %v1018 = vpop.f32.mrf.mxu0
        %v1019 = vadd.f32 0.0, %v1018
        %1020 = vmatprep.mubr.bf16.mxu0 0
        %1021 = vmatmul.mubr.bf16.gmra.mxu0 %v243
        %v1022 = vpop.f32.mrf.mxu0
        %v1023 = vadd.f32 0.0, %v1022
        %v1024 = vpop.f32.mrf.mxu0
        %v1025 = vadd.f32 0.0, %v1024
        %v1026 = vpop.f32.mrf.mxu0
        %v1027 = vadd.f32 0.0, %v1026
        %v1028 = vpop.f32.mrf.mxu0
        %v1029 = vadd.f32 0.0, %v1028
        %1030 = vdwg.mxu0
        %1031 = vmatprep.subr.bf16.mxu0 %v618
        %1032 = vmatpush1.bf16.msra.mxu0 %v617
        %1033 = vmatprep.subr.bf16.mxu0 %v609
        %1034 = vmatpush1.bf16.msra.mxu0 %v608
        %1035 = vmatprep.subr.bf16.mxu0 %v600
        %1036 = vmatpush1.bf16.msra.mxu0 %v599
        %1037 = vmatprep.subr.bf16.mxu0 %v591
        %1038 = vmatpush1.bf16.msra.mxu0 %v590
        %1039 = vmatprep.subr.bf16.mxu0 %v582
        %1040 = vmatpush1.bf16.msra.mxu0 %v581
        %1041 = vmatprep.subr.bf16.mxu0 %v573
        %1042 = vmatpush1.bf16.msra.mxu0 %v572
        %1043 = vmatprep.subr.bf16.mxu0 %v564
        %1044 = vmatpush1.bf16.msra.mxu0 %v563
        %1045 = vmatprep.subr.bf16.mxu0 %v555
        %1046 = vmatpush1.bf16.msra.mxu0 %v554
        %1047 = vmatprep.subr.bf16.mxu0 0
        %1048 = vmatpush2.bf16.msra.mxu0 0
        %1049 = vmatprep.subr.bf16.mxu0 0
        %1050 = vmatpush2.bf16.msra.mxu0 0
        %1051 = vmatprep.subr.bf16.mxu0 0
        %1052 = vmatpush2.bf16.msra.mxu0 0
        %1053 = vmatprep.subr.bf16.mxu0 0
        %1054 = vmatpush2.bf16.msra.mxu0 0
        %1055 = vmatprep.subr.bf16.mxu0 0
        %1056 = vmatpush2.bf16.msra.mxu0 0
        %1057 = vmatprep.subr.bf16.mxu0 0
        %1058 = vmatpush2.bf16.msra.mxu0 0
        %1059 = vmatprep.subr.bf16.mxu0 0
        %1060 = vmatpush2.bf16.msra.mxu0 0
        %1061 = vmatprep.subr.bf16.mxu0 0
        %1062 = vmatpush2.bf16.msra.mxu0 0
        %1063 = vmatprep.mubr.bf16.mxu0 0
        %1064 = vmatmul.mubr.bf16.gmra.mxu0 %v236
        %v1065 = vpop.f32.mrf.mxu0
        %v1066 = vadd.f32 0.0, %v1065
        %v1067 = vpop.f32.mrf.mxu0
        %v1068 = vadd.f32 0.0, %v1067
        %v1069 = vpop.f32.mrf.mxu0
        %v1070 = vadd.f32 0.0, %v1069
        %v1071 = vpop.f32.mrf.mxu0
        %v1072 = vadd.f32 0.0, %v1071
        %1073 = vmatprep.mubr.bf16.mxu0 0
        %1074 = vmatmul.mubr.bf16.gmra.mxu0 %v237
        %v1075 = vpop.f32.mrf.mxu0
        %v1076 = vadd.f32 0.0, %v1075
        %v1077 = vpop.f32.mrf.mxu0
        %v1078 = vadd.f32 0.0, %v1077
        %v1079 = vpop.f32.mrf.mxu0
        %v1080 = vadd.f32 0.0, %v1079
        %v1081 = vpop.f32.mrf.mxu0
        %v1082 = vadd.f32 0.0, %v1081
        %1083 = vmatprep.mubr.bf16.mxu0 0
        %1084 = vmatmul.mubr.bf16.gmra.mxu0 %v238
        %v1085 = vpop.f32.mrf.mxu0
        %v1086 = vadd.f32 0.0, %v1085
        %v1087 = vpop.f32.mrf.mxu0
        %v1088 = vadd.f32 0.0, %v1087
        %v1089 = vpop.f32.mrf.mxu0
        %v1090 = vadd.f32 0.0, %v1089
        %v1091 = vpop.f32.mrf.mxu0
        %v1092 = vadd.f32 0.0, %v1091
        %1093 = vmatprep.mubr.bf16.mxu0 0
        %1094 = vmatmul.mubr.bf16.gmra.mxu0 %v239
        %v1095 = vpop.f32.mrf.mxu0
        %v1096 = vadd.f32 0.0, %v1095
        %v1097 = vpop.f32.mrf.mxu0
        %v1098 = vadd.f32 0.0, %v1097
        %v1099 = vpop.f32.mrf.mxu0
        %v1100 = vadd.f32 0.0, %v1099
        %v1101 = vpop.f32.mrf.mxu0
        %v1102 = vadd.f32 0.0, %v1101
        %1103 = vmatprep.mubr.bf16.mxu0 0
        %1104 = vmatmul.mubr.bf16.gmra.mxu0 %v240
        %v1105 = vpop.f32.mrf.mxu0
        %v1106 = vadd.f32 0.0, %v1105
        %v1107 = vpop.f32.mrf.mxu0
        %v1108 = vadd.f32 0.0, %v1107
        %v1109 = vpop.f32.mrf.mxu0
        %v1110 = vadd.f32 0.0, %v1109
        %v1111 = vpop.f32.mrf.mxu0
        %v1112 = vadd.f32 0.0, %v1111
        %1113 = vmatprep.mubr.bf16.mxu0 0
        %1114 = vmatmul.mubr.bf16.gmra.mxu0 %v241
        %v1115 = vpop.f32.mrf.mxu0
        %v1116 = vadd.f32 0.0, %v1115
        %v1117 = vpop.f32.mrf.mxu0
        %v1118 = vadd.f32 0.0, %v1117
        %v1119 = vpop.f32.mrf.mxu0
        %v1120 = vadd.f32 0.0, %v1119
        %v1121 = vpop.f32.mrf.mxu0
        %v1122 = vadd.f32 0.0, %v1121
        %1123 = vmatprep.mubr.bf16.mxu0 0
        %1124 = vmatmul.mubr.bf16.gmra.mxu0 %v242
        %v1125 = vpop.f32.mrf.mxu0
        %v1126 = vadd.f32 0.0, %v1125
        %v1127 = vpop.f32.mrf.mxu0
        %v1128 = vadd.f32 0.0, %v1127
        %v1129 = vpop.f32.mrf.mxu0
        %v1130 = vadd.f32 0.0, %v1129
        %v1131 = vpop.f32.mrf.mxu0
        %v1132 = vadd.f32 0.0, %v1131
        %1133 = vmatprep.mubr.bf16.mxu0 0
        %1134 = vmatmul.mubr.bf16.gmra.mxu0 %v243
        %v1135 = vpop.f32.mrf.mxu0
        %v1136 = vadd.f32 0.0, %v1135
        %v1137 = vpop.f32.mrf.mxu0
        %v1138 = vadd.f32 0.0, %v1137
        %v1139 = vpop.f32.mrf.mxu0
        %v1140 = vadd.f32 0.0, %v1139
        %v1141 = vpop.f32.mrf.mxu0
        %v1142 = vadd.f32 0.0, %v1141
        %1143 = vdwg.mxu0
        %1144 = vmatprep.subr.bf16.mxu0 0
        %1145 = vmatpush1.bf16.msra.mxu0 %v619
        %1146 = vmatprep.subr.bf16.mxu0 0
        %1147 = vmatpush1.bf16.msra.mxu0 %v610
        %1148 = vmatprep.subr.bf16.mxu0 0
        %1149 = vmatpush1.bf16.msra.mxu0 %v601
        %1150 = vmatprep.subr.bf16.mxu0 0
        %1151 = vmatpush1.bf16.msra.mxu0 %v592
        %1152 = vmatprep.subr.bf16.mxu0 0
        %1153 = vmatpush1.bf16.msra.mxu0 %v583
        %1154 = vmatprep.subr.bf16.mxu0 0
        %1155 = vmatpush1.bf16.msra.mxu0 %v574
        %1156 = vmatprep.subr.bf16.mxu0 0
        %1157 = vmatpush1.bf16.msra.mxu0 %v565
        %1158 = vmatprep.subr.bf16.mxu0 0
        %1159 = vmatpush1.bf16.msra.mxu0 %v556
        %1160 = vmatprep.subr.bf16.mxu0 0
        %1161 = vmatpush2.bf16.msra.mxu0 0
        %1162 = vmatprep.subr.bf16.mxu0 0
        %1163 = vmatpush2.bf16.msra.mxu0 0
        %1164 = vmatprep.subr.bf16.mxu0 0
        %1165 = vmatpush2.bf16.msra.mxu0 0
        %1166 = vmatprep.subr.bf16.mxu0 0
        %1167 = vmatpush2.bf16.msra.mxu0 0
        %1168 = vmatprep.subr.bf16.mxu0 0
        %1169 = vmatpush2.bf16.msra.mxu0 0
        %1170 = vmatprep.subr.bf16.mxu0 0
        %1171 = vmatpush2.bf16.msra.mxu0 0
        %1172 = vmatprep.subr.bf16.mxu0 0
        %1173 = vmatpush2.bf16.msra.mxu0 0
        %1174 = vmatprep.subr.bf16.mxu0 0
        %1175 = vmatpush2.bf16.msra.mxu0 0
        %1176 = vmatprep.mubr.bf16.mxu0 0
        %1177 = vmatmul.mubr.bf16.gmra.mxu0 %v236
        %v1178 = vpop.f32.mrf.mxu0
        %v1179 = vadd.f32 0.0, %v1178
        %v1180 = vpop.f32.mrf.mxu0
        %v1181 = vpop.f32.mrf.mxu0
        %v1182 = vadd.f32 0.0, %v1181
        %v1183 = vpop.f32.mrf.mxu0
        %1184 = vmatprep.mubr.bf16.mxu0 0
        %1185 = vmatmul.mubr.bf16.gmra.mxu0 %v237
        %v1186 = vpop.f32.mrf.mxu0
        %v1187 = vadd.f32 0.0, %v1186
        %v1188 = vpop.f32.mrf.mxu0
        %v1189 = vpop.f32.mrf.mxu0
        %v1190 = vadd.f32 0.0, %v1189
        %v1191 = vpop.f32.mrf.mxu0
        %1192 = vmatprep.mubr.bf16.mxu0 0
        %1193 = vmatmul.mubr.bf16.gmra.mxu0 %v238
        %v1194 = vpop.f32.mrf.mxu0
        %v1195 = vadd.f32 0.0, %v1194
        %v1196 = vpop.f32.mrf.mxu0
        %v1197 = vpop.f32.mrf.mxu0
        %v1198 = vadd.f32 0.0, %v1197
        %v1199 = vpop.f32.mrf.mxu0
        %1200 = vmatprep.mubr.bf16.mxu0 0
        %1201 = vmatmul.mubr.bf16.gmra.mxu0 %v239
        %v1202 = vpop.f32.mrf.mxu0
        %v1203 = vadd.f32 0.0, %v1202
        %v1204 = vpop.f32.mrf.mxu0
        %v1205 = vpop.f32.mrf.mxu0
        %v1206 = vadd.f32 0.0, %v1205
        %v1207 = vpop.f32.mrf.mxu0
        %1208 = vmatprep.mubr.bf16.mxu0 0
        %1209 = vmatmul.mubr.bf16.gmra.mxu0 %v240
        %v1210 = vpop.f32.mrf.mxu0
        %v1211 = vadd.f32 0.0, %v1210
        %v1212 = vpop.f32.mrf.mxu0
        %v1213 = vpop.f32.mrf.mxu0
        %v1214 = vadd.f32 0.0, %v1213
        %v1215 = vpop.f32.mrf.mxu0
        %1216 = vmatprep.mubr.bf16.mxu0 0
        %1217 = vmatmul.mubr.bf16.gmra.mxu0 %v241
        %v1218 = vpop.f32.mrf.mxu0
        %v1219 = vadd.f32 0.0, %v1218
        %v1220 = vpop.f32.mrf.mxu0
        %v1221 = vpop.f32.mrf.mxu0
        %v1222 = vadd.f32 0.0, %v1221
        %v1223 = vpop.f32.mrf.mxu0
        %1224 = vmatprep.mubr.bf16.mxu0 0
        %1225 = vmatmul.mubr.bf16.gmra.mxu0 %v242
        %v1226 = vpop.f32.mrf.mxu0
        %v1227 = vadd.f32 0.0, %v1226
        %v1228 = vpop.f32.mrf.mxu0
        %v1229 = vpop.f32.mrf.mxu0
        %v1230 = vadd.f32 0.0, %v1229
        %v1231 = vpop.f32.mrf.mxu0
        %1232 = vmatprep.mubr.bf16.mxu0 0
        %1233 = vmatmul.mubr.bf16.gmra.mxu0 %v243
        %v1234 = vpop.f32.mrf.mxu0
        %v1235 = vadd.f32 0.0, %v1234
        %v1236 = vpop.f32.mrf.mxu0
        %v1237 = vpop.f32.mrf.mxu0
        %v1238 = vadd.f32 0.0, %v1237
        %v1239 = vpop.f32.mrf.mxu0
        %1240 = vdwg.mxu0
        %v1241 = vlaneseq
        %v1242 = vshrl.u32 %v1241, 7
        %v1243 = vsub.s32 0, %v1242
        %v1244 = vrot.slane %v219, %v1243
        %v1245 = vadd.f32 %v727, %v1244
        %v1246 = vadd.f32 %v731, %v1244
        %v1247 = vadd.f32 %v737, %v1244
        %v1248 = vadd.f32 %v741, %v1244
        %v1249 = vadd.f32 %v747, %v1244
        %v1250 = vadd.f32 %v751, %v1244
        %v1251 = vadd.f32 %v757, %v1244
        %v1252 = vadd.f32 %v761, %v1244
        %v1253 = vadd.f32 %v767, %v1244
        %v1254 = vadd.f32 %v771, %v1244
        %v1255 = vadd.f32 %v777, %v1244
        %v1256 = vadd.f32 %v781, %v1244
        %v1257 = vadd.f32 %v787, %v1244
        %v1258 = vadd.f32 %v791, %v1244
        %v1259 = vadd.f32 %v797, %v1244
        %v1260 = vadd.f32 %v801, %v1244
        %v1261 = vrot.slane %v729, 1
        %v1262 = vrot.slane %v739, 1
        %v1263 = vrot.slane %v749, 1
        %v1264 = vrot.slane %v759, 1
        %v1265 = vrot.slane %v769, 1
        %v1266 = vrot.slane %v779, 1
        %v1267 = vrot.slane %v789, 1
        %v1268 = vrot.slane %v799, 1
        %v1269 = vrot.slane %v733, 1
        %v1270 = vrot.slane %v743, 1
        %v1271 = vrot.slane %v753, 1
        %v1272 = vrot.slane %v763, 1
        %v1273 = vrot.slane %v773, 1
        %v1274 = vrot.slane %v783, 1
        %v1275 = vrot.slane %v793, 1
        %v1276 = vrot.slane %v803, 1
        %v1277 = vlaneseq
        %v1278 = vshrl.u32 %v1277, 7
        %vm1279 = vcmp.lt.s32.totalorder %v1278, 7
        %v1280 = vsel %vm1279, %v1261, %v1269
        %v1281 = vsel %vm1279, %v1262, %v1270
        %v1282 = vsel %vm1279, %v1263, %v1271
        %v1283 = vsel %vm1279, %v1264, %v1272
        %v1284 = vsel %vm1279, %v1265, %v1273
        %v1285 = vsel %vm1279, %v1266, %v1274
        %v1286 = vsel %vm1279, %v1267, %v1275
        %v1287 = vsel %vm1279, %v1268, %v1276
        %v1288 = vsel %vm1279, %v1269, %v1261
        %v1289 = vsel %vm1279, %v1270, %v1262
        %v1290 = vsel %vm1279, %v1271, %v1263
        %v1291 = vsel %vm1279, %v1272, %v1264
        %v1292 = vsel %vm1279, %v1273, %v1265
        %v1293 = vsel %vm1279, %v1274, %v1266
        %v1294 = vsel %vm1279, %v1275, %v1267
        %v1295 = vsel %vm1279, %v1276, %v1268
        %v1296 = vadd.f32 %v1245, %v1280
        %v1297 = vadd.f32 %v1246, %v1288
        %v1298 = vadd.f32 %v1247, %v1281
        %v1299 = vadd.f32 %v1248, %v1289
        %v1300 = vadd.f32 %v1249, %v1282
        %v1301 = vadd.f32 %v1250, %v1290
        %v1302 = vadd.f32 %v1251, %v1283
        %v1303 = vadd.f32 %v1252, %v1291
        %v1304 = vadd.f32 %v1253, %v1284
        %v1305 = vadd.f32 %v1254, %v1292
        %v1306 = vadd.f32 %v1255, %v1285
        %v1307 = vadd.f32 %v1256, %v1293
        %v1308 = vadd.f32 %v1257, %v1286
        %v1309 = vadd.f32 %v1258, %v1294
        %v1310 = vadd.f32 %v1259, %v1287
        %v1311 = vadd.f32 %v1260, %v1295
        %v1312 = vmax.f32 %v1296, 0.0
        %v1313 = vmax.f32 %v1297, 0.0
        %v1314 = vmax.f32 %v1298, 0.0
        %v1315 = vmax.f32 %v1299, 0.0
        %v1316 = vmax.f32 %v1300, 0.0
        %v1317 = vmax.f32 %v1301, 0.0
        %v1318 = vmax.f32 %v1302, 0.0
        %v1319 = vmax.f32 %v1303, 0.0
        %v1320 = vmax.f32 %v1304, 0.0
        %v1321 = vmax.f32 %v1305, 0.0
        %v1322 = vmax.f32 %v1306, 0.0
        %v1323 = vmax.f32 %v1307, 0.0
        %v1324 = vmax.f32 %v1308, 0.0
        %v1325 = vmax.f32 %v1309, 0.0
        %v1326 = vmax.f32 %v1310, 0.0
        %v1327 = vmax.f32 %v1311, 0.0
        %v1328 = vadd.s32 %v1278, 8
        %vm1329 = vcmp.le.s32.totalorder %v1278, 14
        %vm1330 = vcmp.le.s32.totalorder %v1328, 14
        %v1331 = vsel %vm1329, %v1312, 0.0
        %v1332 = vsel %vm1330, %v1313, 0.0
        %v1333 = vsel %vm1329, %v1314, 0.0
        %v1334 = vsel %vm1330, %v1315, 0.0
        %v1335 = vsel %vm1329, %v1316, 0.0
        %v1336 = vsel %vm1330, %v1317, 0.0
        %v1337 = vsel %vm1329, %v1318, 0.0
        %v1338 = vsel %vm1330, %v1319, 0.0
        %v1339 = vsel %vm1329, %v1320, 0.0
        %v1340 = vsel %vm1330, %v1321, 0.0
        %v1341 = vsel %vm1329, %v1322, 0.0
        %v1342 = vsel %vm1330, %v1323, 0.0
        %v1343 = vsel %vm1329, %v1324, 0.0
        %v1344 = vsel %vm1330, %v1325, 0.0
        %v1345 = vsel %vm1329, %v1326, 0.0
        %v1346 = vsel %vm1330, %v1327, 0.0
        %v1347 = vmax.f32 %v1331, %v1332
        %v1348 = vrot.slane %v1347, 4
        %v1349 = vmax.f32 %v1347, %v1348
        %v1350 = vrot.slane %v1349, 2
        %v1351 = vmax.f32 %v1349, %v1350
        %v1352 = vrot.slane %v1351, 1
        %v1353 = vmax.f32 %v1351, %v1352
        %v1354 = vmax.f32 %v1333, %v1334
        %v1355 = vrot.slane %v1354, 4
        %v1356 = vmax.f32 %v1354, %v1355
        %v1357 = vrot.slane %v1356, 2
        %v1358 = vmax.f32 %v1356, %v1357
        %v1359 = vrot.slane %v1358, 1
        %v1360 = vmax.f32 %v1358, %v1359
        %v1361 = vmax.f32 %v1335, %v1336
        %v1362 = vrot.slane %v1361, 4
        %v1363 = vmax.f32 %v1361, %v1362
        %v1364 = vrot.slane %v1363, 2
        %v1365 = vmax.f32 %v1363, %v1364
        %v1366 = vrot.slane %v1365, 1
        %v1367 = vmax.f32 %v1365, %v1366
        %v1368 = vmax.f32 %v1337, %v1338
        %v1369 = vrot.slane %v1368, 4
        %v1370 = vmax.f32 %v1368, %v1369
        %v1371 = vrot.slane %v1370, 2
        %v1372 = vmax.f32 %v1370, %v1371
        %v1373 = vrot.slane %v1372, 1
        %v1374 = vmax.f32 %v1372, %v1373
        %v1375 = vmax.f32 %v1339, %v1340
        %v1376 = vrot.slane %v1375, 4
        %v1377 = vmax.f32 %v1375, %v1376
        %v1378 = vrot.slane %v1377, 2
        %v1379 = vmax.f32 %v1377, %v1378
        %v1380 = vrot.slane %v1379, 1
        %v1381 = vmax.f32 %v1379, %v1380
        %v1382 = vmax.f32 %v1341, %v1342
        %v1383 = vrot.slane %v1382, 4
        %v1384 = vmax.f32 %v1382, %v1383
        %v1385 = vrot.slane %v1384, 2
        %v1386 = vmax.f32 %v1384, %v1385
        %v1387 = vrot.slane %v1386, 1
        %v1388 = vmax.f32 %v1386, %v1387
        %v1389 = vmax.f32 %v1343, %v1344
        %v1390 = vrot.slane %v1389, 4
        %v1391 = vmax.f32 %v1389, %v1390
        %v1392 = vrot.slane %v1391, 2
        %v1393 = vmax.f32 %v1391, %v1392
        %v1394 = vrot.slane %v1393, 1
        %v1395 = vmax.f32 %v1393, %v1394
        %v1396 = vmax.f32 %v1345, %v1346
        %v1397 = vrot.slane %v1396, 4
        %v1398 = vmax.f32 %v1396, %v1397
        %v1399 = vrot.slane %v1398, 2
        %v1400 = vmax.f32 %v1398, %v1399
        %v1401 = vrot.slane %v1400, 1
        %v1402 = vmax.f32 %v1400, %v1401
        %v1403 = vlaneseq
        %v1404 = vshrl.u32 %v1403, 7
        %v1405 = vsub.s32 1, %v1404
        %v1406 = vrot.slane %v219, %v1405
        %v1407 = vadd.f32 %v840, %v1406
        %v1408 = vadd.f32 %v844, %v1406
        %v1409 = vadd.f32 %v850, %v1406
        %v1410 = vadd.f32 %v854, %v1406
        %v1411 = vadd.f32 %v860, %v1406
        %v1412 = vadd.f32 %v864, %v1406
        %v1413 = vadd.f32 %v870, %v1406
        %v1414 = vadd.f32 %v874, %v1406
        %v1415 = vadd.f32 %v880, %v1406
        %v1416 = vadd.f32 %v884, %v1406
        %v1417 = vadd.f32 %v890, %v1406
        %v1418 = vadd.f32 %v894, %v1406
        %v1419 = vadd.f32 %v900, %v1406
        %v1420 = vadd.f32 %v904, %v1406
        %v1421 = vadd.f32 %v910, %v1406
        %v1422 = vadd.f32 %v914, %v1406
        %v1423 = vrot.slane %v842, 1
        %v1424 = vrot.slane %v852, 1
        %v1425 = vrot.slane %v862, 1
        %v1426 = vrot.slane %v872, 1
        %v1427 = vrot.slane %v882, 1
        %v1428 = vrot.slane %v892, 1
        %v1429 = vrot.slane %v902, 1
        %v1430 = vrot.slane %v912, 1
        %v1431 = vrot.slane %v846, 1
        %v1432 = vrot.slane %v856, 1
        %v1433 = vrot.slane %v866, 1
        %v1434 = vrot.slane %v876, 1
        %v1435 = vrot.slane %v886, 1
        %v1436 = vrot.slane %v896, 1
        %v1437 = vrot.slane %v906, 1
        %v1438 = vrot.slane %v916, 1
        %v1439 = vsel %vm1279, %v1423, %v1431
        %v1440 = vsel %vm1279, %v1424, %v1432
        %v1441 = vsel %vm1279, %v1425, %v1433
        %v1442 = vsel %vm1279, %v1426, %v1434
        %v1443 = vsel %vm1279, %v1427, %v1435
        %v1444 = vsel %vm1279, %v1428, %v1436
        %v1445 = vsel %vm1279, %v1429, %v1437
        %v1446 = vsel %vm1279, %v1430, %v1438
        %v1447 = vsel %vm1279, %v1431, %v1423
        %v1448 = vsel %vm1279, %v1432, %v1424
        %v1449 = vsel %vm1279, %v1433, %v1425
        %v1450 = vsel %vm1279, %v1434, %v1426
        %v1451 = vsel %vm1279, %v1435, %v1427
        %v1452 = vsel %vm1279, %v1436, %v1428
        %v1453 = vsel %vm1279, %v1437, %v1429
        %v1454 = vsel %vm1279, %v1438, %v1430
        %v1455 = vadd.f32 %v1407, %v1439
        %v1456 = vadd.f32 %v1408, %v1447
        %v1457 = vadd.f32 %v1409, %v1440
        %v1458 = vadd.f32 %v1410, %v1448
        %v1459 = vadd.f32 %v1411, %v1441
        %v1460 = vadd.f32 %v1412, %v1449
        %v1461 = vadd.f32 %v1413, %v1442
        %v1462 = vadd.f32 %v1414, %v1450
        %v1463 = vadd.f32 %v1415, %v1443
        %v1464 = vadd.f32 %v1416, %v1451
        %v1465 = vadd.f32 %v1417, %v1444
        %v1466 = vadd.f32 %v1418, %v1452
        %v1467 = vadd.f32 %v1419, %v1445
        %v1468 = vadd.f32 %v1420, %v1453
        %v1469 = vadd.f32 %v1421, %v1446
        %v1470 = vadd.f32 %v1422, %v1454
        %v1471 = vrot.slane %v953, 2
        %v1472 = vrot.slane %v963, 2
        %v1473 = vrot.slane %v973, 2
        %v1474 = vrot.slane %v983, 2
        %v1475 = vrot.slane %v993, 2
        %v1476 = vrot.slane %v1003, 2
        %v1477 = vrot.slane %v1013, 2
        %v1478 = vrot.slane %v1023, 2
        %v1479 = vrot.slane %v957, 2
        %v1480 = vrot.slane %v967, 2
        %v1481 = vrot.slane %v977, 2
        %v1482 = vrot.slane %v987, 2
        %v1483 = vrot.slane %v997, 2
        %v1484 = vrot.slane %v1007, 2
        %v1485 = vrot.slane %v1017, 2
        %v1486 = vrot.slane %v1027, 2
        %vm1487 = vcmp.lt.s32.totalorder %v1278, 6
        %v1488 = vsel %vm1487, %v1471, %v1479
        %v1489 = vsel %vm1487, %v1472, %v1480
        %v1490 = vsel %vm1487, %v1473, %v1481
        %v1491 = vsel %vm1487, %v1474, %v1482
        %v1492 = vsel %vm1487, %v1475, %v1483
        %v1493 = vsel %vm1487, %v1476, %v1484
        %v1494 = vsel %vm1487, %v1477, %v1485
        %v1495 = vsel %vm1487, %v1478, %v1486
        %v1496 = vsel %vm1487, %v1479, %v1471
        %v1497 = vsel %vm1487, %v1480, %v1472
        %v1498 = vsel %vm1487, %v1481, %v1473
        %v1499 = vsel %vm1487, %v1482, %v1474
        %v1500 = vsel %vm1487, %v1483, %v1475
        %v1501 = vsel %vm1487, %v1484, %v1476
        %v1502 = vsel %vm1487, %v1485, %v1477
        %v1503 = vsel %vm1487, %v1486, %v1478
        %v1504 = vadd.f32 %v1455, %v1488
        %v1505 = vadd.f32 %v1456, %v1496
        %v1506 = vadd.f32 %v1457, %v1489
        %v1507 = vadd.f32 %v1458, %v1497
        %v1508 = vadd.f32 %v1459, %v1490
        %v1509 = vadd.f32 %v1460, %v1498
        %v1510 = vadd.f32 %v1461, %v1491
        %v1511 = vadd.f32 %v1462, %v1499
        %v1512 = vadd.f32 %v1463, %v1492
        %v1513 = vadd.f32 %v1464, %v1500
        %v1514 = vadd.f32 %v1465, %v1493
        %v1515 = vadd.f32 %v1466, %v1501
        %v1516 = vadd.f32 %v1467, %v1494
        %v1517 = vadd.f32 %v1468, %v1502
        %v1518 = vadd.f32 %v1469, %v1495
        %v1519 = vadd.f32 %v1470, %v1503
        %v1520 = vmax.f32 %v1504, 0.0
        %v1521 = vmax.f32 %v1505, 0.0
        %v1522 = vmax.f32 %v1506, 0.0
        %v1523 = vmax.f32 %v1507, 0.0
        %v1524 = vmax.f32 %v1508, 0.0
        %v1525 = vmax.f32 %v1509, 0.0
        %v1526 = vmax.f32 %v1510, 0.0
        %v1527 = vmax.f32 %v1511, 0.0
        %v1528 = vmax.f32 %v1512, 0.0
        %v1529 = vmax.f32 %v1513, 0.0
        %v1530 = vmax.f32 %v1514, 0.0
        %v1531 = vmax.f32 %v1515, 0.0
        %v1532 = vmax.f32 %v1516, 0.0
        %v1533 = vmax.f32 %v1517, 0.0
        %v1534 = vmax.f32 %v1518, 0.0
        %v1535 = vmax.f32 %v1519, 0.0
        %vm1536 = vcmp.le.s32.totalorder %v1278, 13
        %vm1537 = vcmp.le.s32.totalorder %v1328, 13
        %v1538 = vsel %vm1536, %v1520, 0.0
        %v1539 = vsel %vm1537, %v1521, 0.0
        %v1540 = vsel %vm1536, %v1522, 0.0
        %v1541 = vsel %vm1537, %v1523, 0.0
        %v1542 = vsel %vm1536, %v1524, 0.0
        %v1543 = vsel %vm1537, %v1525, 0.0
        %v1544 = vsel %vm1536, %v1526, 0.0
        %v1545 = vsel %vm1537, %v1527, 0.0
        %v1546 = vsel %vm1536, %v1528, 0.0
        %v1547 = vsel %vm1537, %v1529, 0.0
        %v1548 = vsel %vm1536, %v1530, 0.0
        %v1549 = vsel %vm1537, %v1531, 0.0
        %v1550 = vsel %vm1536, %v1532, 0.0
        %v1551 = vsel %vm1537, %v1533, 0.0
        %v1552 = vsel %vm1536, %v1534, 0.0
        %v1553 = vsel %vm1537, %v1535, 0.0
        %v1554 = vmax.f32 %v1538, %v1539
        %v1555 = vrot.slane %v1554, 4
        %v1556 = vmax.f32 %v1554, %v1555
        %v1557 = vrot.slane %v1556, 2
        %v1558 = vmax.f32 %v1556, %v1557
        %v1559 = vrot.slane %v1558, 1
        %v1560 = vmax.f32 %v1558, %v1559
        %v1561 = vmax.f32 %v1540, %v1541
        %v1562 = vrot.slane %v1561, 4
        %v1563 = vmax.f32 %v1561, %v1562
        %v1564 = vrot.slane %v1563, 2
        %v1565 = vmax.f32 %v1563, %v1564
        %v1566 = vrot.slane %v1565, 1
        %v1567 = vmax.f32 %v1565, %v1566
        %v1568 = vmax.f32 %v1542, %v1543
        %v1569 = vrot.slane %v1568, 4
        %v1570 = vmax.f32 %v1568, %v1569
        %v1571 = vrot.slane %v1570, 2
        %v1572 = vmax.f32 %v1570, %v1571
        %v1573 = vrot.slane %v1572, 1
        %v1574 = vmax.f32 %v1572, %v1573
        %v1575 = vmax.f32 %v1544, %v1545
        %v1576 = vrot.slane %v1575, 4
        %v1577 = vmax.f32 %v1575, %v1576
        %v1578 = vrot.slane %v1577, 2
        %v1579 = vmax.f32 %v1577, %v1578
        %v1580 = vrot.slane %v1579, 1
        %v1581 = vmax.f32 %v1579, %v1580
        %v1582 = vmax.f32 %v1546, %v1547
        %v1583 = vrot.slane %v1582, 4
        %v1584 = vmax.f32 %v1582, %v1583
        %v1585 = vrot.slane %v1584, 2
        %v1586 = vmax.f32 %v1584, %v1585
        %v1587 = vrot.slane %v1586, 1
        %v1588 = vmax.f32 %v1586, %v1587
        %v1589 = vmax.f32 %v1548, %v1549
        %v1590 = vrot.slane %v1589, 4
        %v1591 = vmax.f32 %v1589, %v1590
        %v1592 = vrot.slane %v1591, 2
        %v1593 = vmax.f32 %v1591, %v1592
        %v1594 = vrot.slane %v1593, 1
        %v1595 = vmax.f32 %v1593, %v1594
        %v1596 = vmax.f32 %v1550, %v1551
        %v1597 = vrot.slane %v1596, 4
        %v1598 = vmax.f32 %v1596, %v1597
        %v1599 = vrot.slane %v1598, 2
        %v1600 = vmax.f32 %v1598, %v1599
        %v1601 = vrot.slane %v1600, 1
        %v1602 = vmax.f32 %v1600, %v1601
        %v1603 = vmax.f32 %v1552, %v1553
        %v1604 = vrot.slane %v1603, 4
        %v1605 = vmax.f32 %v1603, %v1604
        %v1606 = vrot.slane %v1605, 2
        %v1607 = vmax.f32 %v1605, %v1606
        %v1608 = vrot.slane %v1607, 1
        %v1609 = vmax.f32 %v1607, %v1608
        %v1610 = vlaneseq
        %v1611 = vshrl.u32 %v1610, 7
        %v1612 = vsub.s32 2, %v1611
        %v1613 = vrot.slane %v219, %v1612
        %v1614 = vadd.f32 %v955, %v1613
        %v1615 = vadd.f32 %v959, %v1613
        %v1616 = vadd.f32 %v965, %v1613
        %v1617 = vadd.f32 %v969, %v1613
        %v1618 = vadd.f32 %v975, %v1613
        %v1619 = vadd.f32 %v979, %v1613
        %v1620 = vadd.f32 %v985, %v1613
        %v1621 = vadd.f32 %v989, %v1613
        %v1622 = vadd.f32 %v995, %v1613
        %v1623 = vadd.f32 %v999, %v1613
        %v1624 = vadd.f32 %v1005, %v1613
        %v1625 = vadd.f32 %v1009, %v1613
        %v1626 = vadd.f32 %v1015, %v1613
        %v1627 = vadd.f32 %v1019, %v1613
        %v1628 = vadd.f32 %v1025, %v1613
        %v1629 = vadd.f32 %v1029, %v1613
        %v1630 = vrot.slane %v1066, 1
        %v1631 = vrot.slane %v1076, 1
        %v1632 = vrot.slane %v1086, 1
        %v1633 = vrot.slane %v1096, 1
        %v1634 = vrot.slane %v1106, 1
        %v1635 = vrot.slane %v1116, 1
        %v1636 = vrot.slane %v1126, 1
        %v1637 = vrot.slane %v1136, 1
        %v1638 = vrot.slane %v1070, 1
        %v1639 = vrot.slane %v1080, 1
        %v1640 = vrot.slane %v1090, 1
        %v1641 = vrot.slane %v1100, 1
        %v1642 = vrot.slane %v1110, 1
        %v1643 = vrot.slane %v1120, 1
        %v1644 = vrot.slane %v1130, 1
        %v1645 = vrot.slane %v1140, 1
        %v1646 = vsel %vm1279, %v1630, %v1638
        %v1647 = vsel %vm1279, %v1631, %v1639
        %v1648 = vsel %vm1279, %v1632, %v1640
        %v1649 = vsel %vm1279, %v1633, %v1641
        %v1650 = vsel %vm1279, %v1634, %v1642
        %v1651 = vsel %vm1279, %v1635, %v1643
        %v1652 = vsel %vm1279, %v1636, %v1644
        %v1653 = vsel %vm1279, %v1637, %v1645
        %v1654 = vsel %vm1279, %v1638, %v1630
        %v1655 = vsel %vm1279, %v1639, %v1631
        %v1656 = vsel %vm1279, %v1640, %v1632
        %v1657 = vsel %vm1279, %v1641, %v1633
        %v1658 = vsel %vm1279, %v1642, %v1634
        %v1659 = vsel %vm1279, %v1643, %v1635
        %v1660 = vsel %vm1279, %v1644, %v1636
        %v1661 = vsel %vm1279, %v1645, %v1637
        %v1662 = vadd.f32 %v1614, %v1646
        %v1663 = vadd.f32 %v1615, %v1654
        %v1664 = vadd.f32 %v1616, %v1647
        %v1665 = vadd.f32 %v1617, %v1655
        %v1666 = vadd.f32 %v1618, %v1648
        %v1667 = vadd.f32 %v1619, %v1656
        %v1668 = vadd.f32 %v1620, %v1649
        %v1669 = vadd.f32 %v1621, %v1657
        %v1670 = vadd.f32 %v1622, %v1650
        %v1671 = vadd.f32 %v1623, %v1658
        %v1672 = vadd.f32 %v1624, %v1651
        %v1673 = vadd.f32 %v1625, %v1659
        %v1674 = vadd.f32 %v1626, %v1652
        %v1675 = vadd.f32 %v1627, %v1660
        %v1676 = vadd.f32 %v1628, %v1653
        %v1677 = vadd.f32 %v1629, %v1661
        %v1678 = vrot.slane %v1068, 2
        %v1679 = vrot.slane %v1078, 2
        %v1680 = vrot.slane %v1088, 2
        %v1681 = vrot.slane %v1098, 2
        %v1682 = vrot.slane %v1108, 2
        %v1683 = vrot.slane %v1118, 2
        %v1684 = vrot.slane %v1128, 2
        %v1685 = vrot.slane %v1138, 2
        %v1686 = vrot.slane %v1072, 2
        %v1687 = vrot.slane %v1082, 2
        %v1688 = vrot.slane %v1092, 2
        %v1689 = vrot.slane %v1102, 2
        %v1690 = vrot.slane %v1112, 2
        %v1691 = vrot.slane %v1122, 2
        %v1692 = vrot.slane %v1132, 2
        %v1693 = vrot.slane %v1142, 2
        %v1694 = vsel %vm1487, %v1678, %v1686
        %v1695 = vsel %vm1487, %v1679, %v1687
        %v1696 = vsel %vm1487, %v1680, %v1688
        %v1697 = vsel %vm1487, %v1681, %v1689
        %v1698 = vsel %vm1487, %v1682, %v1690
        %v1699 = vsel %vm1487, %v1683, %v1691
        %v1700 = vsel %vm1487, %v1684, %v1692
        %v1701 = vsel %vm1487, %v1685, %v1693
        %v1702 = vsel %vm1487, %v1686, %v1678
        %v1703 = vsel %vm1487, %v1687, %v1679
        %v1704 = vsel %vm1487, %v1688, %v1680
        %v1705 = vsel %vm1487, %v1689, %v1681
        %v1706 = vsel %vm1487, %v1690, %v1682
        %v1707 = vsel %vm1487, %v1691, %v1683
        %v1708 = vsel %vm1487, %v1692, %v1684
        %v1709 = vsel %vm1487, %v1693, %v1685
        %v1710 = vadd.f32 %v1662, %v1694
        %v1711 = vadd.f32 %v1663, %v1702
        %v1712 = vadd.f32 %v1664, %v1695
        %v1713 = vadd.f32 %v1665, %v1703
        %v1714 = vadd.f32 %v1666, %v1696
        %v1715 = vadd.f32 %v1667, %v1704
        %v1716 = vadd.f32 %v1668, %v1697
        %v1717 = vadd.f32 %v1669, %v1705
        %v1718 = vadd.f32 %v1670, %v1698
        %v1719 = vadd.f32 %v1671, %v1706
        %v1720 = vadd.f32 %v1672, %v1699
        %v1721 = vadd.f32 %v1673, %v1707
        %v1722 = vadd.f32 %v1674, %v1700
        %v1723 = vadd.f32 %v1675, %v1708
        %v1724 = vadd.f32 %v1676, %v1701
        %v1725 = vadd.f32 %v1677, %v1709
        %v1726 = vrot.slane %v1179, 3
        %v1727 = vrot.slane %v1187, 3
        %v1728 = vrot.slane %v1195, 3
        %v1729 = vrot.slane %v1203, 3
        %v1730 = vrot.slane %v1211, 3
        %v1731 = vrot.slane %v1219, 3
        %v1732 = vrot.slane %v1227, 3
        %v1733 = vrot.slane %v1235, 3
        %v1734 = vrot.slane %v1182, 3
        %v1735 = vrot.slane %v1190, 3
        %v1736 = vrot.slane %v1198, 3
        %v1737 = vrot.slane %v1206, 3
        %v1738 = vrot.slane %v1214, 3
        %v1739 = vrot.slane %v1222, 3
        %v1740 = vrot.slane %v1230, 3
        %v1741 = vrot.slane %v1238, 3
        %vm1742 = vcmp.lt.s32.totalorder %v1278, 5
        %v1743 = vsel %vm1742, %v1726, %v1734
        %v1744 = vsel %vm1742, %v1727, %v1735
        %v1745 = vsel %vm1742, %v1728, %v1736
        %v1746 = vsel %vm1742, %v1729, %v1737
        %v1747 = vsel %vm1742, %v1730, %v1738
        %v1748 = vsel %vm1742, %v1731, %v1739
        %v1749 = vsel %vm1742, %v1732, %v1740
        %v1750 = vsel %vm1742, %v1733, %v1741
        %v1751 = vsel %vm1742, %v1734, %v1726
        %v1752 = vsel %vm1742, %v1735, %v1727
        %v1753 = vsel %vm1742, %v1736, %v1728
        %v1754 = vsel %vm1742, %v1737, %v1729
        %v1755 = vsel %vm1742, %v1738, %v1730
        %v1756 = vsel %vm1742, %v1739, %v1731
        %v1757 = vsel %vm1742, %v1740, %v1732
        %v1758 = vsel %vm1742, %v1741, %v1733
        %v1759 = vadd.f32 %v1710, %v1743
        %v1760 = vadd.f32 %v1711, %v1751
        %v1761 = vadd.f32 %v1712, %v1744
        %v1762 = vadd.f32 %v1713, %v1752
        %v1763 = vadd.f32 %v1714, %v1745
        %v1764 = vadd.f32 %v1715, %v1753
        %v1765 = vadd.f32 %v1716, %v1746
        %v1766 = vadd.f32 %v1717, %v1754
        %v1767 = vadd.f32 %v1718, %v1747
        %v1768 = vadd.f32 %v1719, %v1755
        %v1769 = vadd.f32 %v1720, %v1748
        %v1770 = vadd.f32 %v1721, %v1756
        %v1771 = vadd.f32 %v1722, %v1749
        %v1772 = vadd.f32 %v1723, %v1757
        %v1773 = vadd.f32 %v1724, %v1750
        %v1774 = vadd.f32 %v1725, %v1758
        %v1775 = vmax.f32 %v1759, 0.0
        %v1776 = vmax.f32 %v1760, 0.0
        %v1777 = vmax.f32 %v1761, 0.0
        %v1778 = vmax.f32 %v1762, 0.0
        %v1779 = vmax.f32 %v1763, 0.0
        %v1780 = vmax.f32 %v1764, 0.0
        %v1781 = vmax.f32 %v1765, 0.0
        %v1782 = vmax.f32 %v1766, 0.0
        %v1783 = vmax.f32 %v1767, 0.0
        %v1784 = vmax.f32 %v1768, 0.0
        %v1785 = vmax.f32 %v1769, 0.0
        %v1786 = vmax.f32 %v1770, 0.0
        %v1787 = vmax.f32 %v1771, 0.0
        %v1788 = vmax.f32 %v1772, 0.0
        %v1789 = vmax.f32 %v1773, 0.0
        %v1790 = vmax.f32 %v1774, 0.0
        %vm1791 = vcmp.le.s32.totalorder %v1278, 12
        %vm1792 = vcmp.le.s32.totalorder %v1328, 12
        %v1793 = vsel %vm1791, %v1775, 0.0
        %v1794 = vsel %vm1792, %v1776, 0.0
        %v1795 = vsel %vm1791, %v1777, 0.0
        %v1796 = vsel %vm1792, %v1778, 0.0
        %v1797 = vsel %vm1791, %v1779, 0.0
        %v1798 = vsel %vm1792, %v1780, 0.0
        %v1799 = vsel %vm1791, %v1781, 0.0
        %v1800 = vsel %vm1792, %v1782, 0.0
        %v1801 = vsel %vm1791, %v1783, 0.0
        %v1802 = vsel %vm1792, %v1784, 0.0
        %v1803 = vsel %vm1791, %v1785, 0.0
        %v1804 = vsel %vm1792, %v1786, 0.0
        %v1805 = vsel %vm1791, %v1787, 0.0
        %v1806 = vsel %vm1792, %v1788, 0.0
        %v1807 = vsel %vm1791, %v1789, 0.0
        %v1808 = vsel %vm1792, %v1790, 0.0
        %v1809 = vmax.f32 %v1793, %v1794
        %v1810 = vrot.slane %v1809, 4
        %v1811 = vmax.f32 %v1809, %v1810
        %v1812 = vrot.slane %v1811, 2
        %v1813 = vmax.f32 %v1811, %v1812
        %v1814 = vrot.slane %v1813, 1
        %v1815 = vmax.f32 %v1813, %v1814
        %v1816 = vmax.f32 %v1795, %v1796
        %v1817 = vrot.slane %v1816, 4
        %v1818 = vmax.f32 %v1816, %v1817
        %v1819 = vrot.slane %v1818, 2
        %v1820 = vmax.f32 %v1818, %v1819
        %v1821 = vrot.slane %v1820, 1
        %v1822 = vmax.f32 %v1820, %v1821
        %v1823 = vmax.f32 %v1797, %v1798
        %v1824 = vrot.slane %v1823, 4
        %v1825 = vmax.f32 %v1823, %v1824
        %v1826 = vrot.slane %v1825, 2
        %v1827 = vmax.f32 %v1825, %v1826
        %v1828 = vrot.slane %v1827, 1
        %v1829 = vmax.f32 %v1827, %v1828
        %v1830 = vmax.f32 %v1799, %v1800
        %v1831 = vrot.slane %v1830, 4
        %v1832 = vmax.f32 %v1830, %v1831
        %v1833 = vrot.slane %v1832, 2
        %v1834 = vmax.f32 %v1832, %v1833
        %v1835 = vrot.slane %v1834, 1
        %v1836 = vmax.f32 %v1834, %v1835
        %v1837 = vmax.f32 %v1801, %v1802
        %v1838 = vrot.slane %v1837, 4
        %v1839 = vmax.f32 %v1837, %v1838
        %v1840 = vrot.slane %v1839, 2
        %v1841 = vmax.f32 %v1839, %v1840
        %v1842 = vrot.slane %v1841, 1
        %v1843 = vmax.f32 %v1841, %v1842
        %v1844 = vmax.f32 %v1803, %v1804
        %v1845 = vrot.slane %v1844, 4
        %v1846 = vmax.f32 %v1844, %v1845
        %v1847 = vrot.slane %v1846, 2
        %v1848 = vmax.f32 %v1846, %v1847
        %v1849 = vrot.slane %v1848, 1
        %v1850 = vmax.f32 %v1848, %v1849
        %v1851 = vmax.f32 %v1805, %v1806
        %v1852 = vrot.slane %v1851, 4
        %v1853 = vmax.f32 %v1851, %v1852
        %v1854 = vrot.slane %v1853, 2
        %v1855 = vmax.f32 %v1853, %v1854
        %v1856 = vrot.slane %v1855, 1
        %v1857 = vmax.f32 %v1855, %v1856
        %v1858 = vmax.f32 %v1807, %v1808
        %v1859 = vrot.slane %v1858, 4
        %v1860 = vmax.f32 %v1858, %v1859
        %v1861 = vrot.slane %v1860, 2
        %v1862 = vmax.f32 %v1860, %v1861
        %v1863 = vrot.slane %v1862, 1
        %v1864 = vmax.f32 %v1862, %v1863
        %vm1873 = vcmask 1041409
        %v1874 = vsel %vm1873, %v1360, %v1353
        %vm1875 = vcmask 1042434
        %v1876 = vsel %vm1875, %v1367, %v1874
        %vm1877 = vcmask 1043459
        %v1878 = vsel %vm1877, %v1374, %v1876
        %vm1879 = vcmask 1044484
        %v1880 = vsel %vm1879, %v1381, %v1878
        %vm1881 = vcmask 1045509
        %v1882 = vsel %vm1881, %v1388, %v1880
        %vm1883 = vcmask 1046534
        %v1884 = vsel %vm1883, %v1395, %v1882
        %vm1885 = vcmask 1047559
        %v1886 = vsel %vm1885, %v1402, %v1884
        %v1896 = vsel %vm1873, %v1567, %v1560
        %v1897 = vsel %vm1875, %v1574, %v1896
        %v1898 = vsel %vm1877, %v1581, %v1897
        %v1899 = vsel %vm1879, %v1588, %v1898
        %v1900 = vsel %vm1881, %v1595, %v1899
        %v1901 = vsel %vm1883, %v1602, %v1900
        %v1902 = vsel %vm1885, %v1609, %v1901
        %v1912 = vsel %vm1873, %v1822, %v1815
        %v1913 = vsel %vm1875, %v1829, %v1912
        %v1914 = vsel %vm1877, %v1836, %v1913
        %v1915 = vsel %vm1879, %v1843, %v1914
        %v1916 = vsel %vm1881, %v1850, %v1915
        %v1917 = vsel %vm1883, %v1857, %v1916
        %v1918 = vsel %vm1885, %v1864, %v1917
        %v1920 = vmax.f32 %v1886, 0.0
        %v1921 = vmax.f32 %v1902, 0.0
        %v1922 = vmax.f32 %v1918, 0.0
        %1923 = vst [vmem:[%s216] sm:$0xff] %v1920
        %1924 = vst [vmem:[%s216 + $0x8] sm:$0xff] %v1921
        %1925 = vst [vmem:[%s216 + $0x10] sm:$0xff] %v1922
        %s1926 = sand.u32 %s97, 1
        %s1927 = scalar_lea.sflag [#allocation4], %s1926
        %s1928 = sand.u32 %s97, 1
        %s1929 = smul.addr %s1928, 24
        %s1930 = scalar_lea.vmem [#allocation8], %s1929
        // Predicated region
        $region45: #{tpu_custom_call.1} parent=31 // pred_check
          %p1931 = pneg %p107
        $region46: #{tpu_custom_call.1} parent=31 // pred_check_branch
          %1933 = sbr.rel (%p1931) target = $region48
        $region47: #{tpu_custom_call.1} parent=31 // pred_region
          %s1935 = ssub.s32 384, 384
          %1936 = vsyncadd %s1927, %s1935
          %s1937 = smul.addr %s21, 3
          %s1938 = smul.addr %s1937, 128
          %s1939 = scalar_lea.hbm %s3, %s1938
          %s1941 = sshll.u32 %s1930, 4
          %s1942 = int_to_ptr.vmem [resolvable:$true] %s1941
          %1944 = dma.vmem_to_hbm [thread:$0]  %s1942, 384, %s1939, %s1927
        $region48: #{tpu_custom_call.1} parent=31 // pred_fallthru
          _
      $region32: #{tpu_custom_call.1} parent=5 // pred_fallthru
        _
      %p1945 = scmp.le.s32.totalorder 2, %s16
      // Predicated region
      $region49: #{tpu_custom_call.1} parent=5 // pred_check
        %p1946 = pneg %p1945
      $region50: #{tpu_custom_call.1} parent=5 // pred_check_branch
        %1948 = sbr.rel (%p1946) target = $region52
      $region51: #{tpu_custom_call.1} parent=5 // pred_region
        %s1949 = ssub.s32 %s16, 2
        // Predicated region
        $region53: #{tpu_custom_call.1} parent=51 // pred_check
          %p1950 = pneg %p113
        $region54: #{tpu_custom_call.1} parent=51 // pred_check_branch
          %1952 = sbr.rel (%p1950) target = $region56
        $region55: #{tpu_custom_call.1} parent=51 // pred_region
          %s1953 = sand.u32 %s98, 1
          %s1954 = scalar_lea.sflag [#allocation4], %s1953
          %s1955 = sand.u32 %s98, 1
          %s1956 = smul.addr %s1955, 24
          %s1957 = scalar_lea.vmem [#allocation8], %s1956
          %1958 = dma.done %s1954, 384
        $region56: #{tpu_custom_call.1} parent=51 // pred_fallthru
          _
      $region52: #{tpu_custom_call.1} parent=5 // pred_fallthru
        _
    $region6: #{tpu_custom_call.1} parent=1 // loop_footer
      %s20 = sadd.s32 1, %s16
    $region7: #{tpu_custom_call.1} parent=1 // loop_footer_branch
      %15 = sbr.rel target = $region3
    $region8: #{tpu_custom_call.1} parent=1 // loop_exit
      _
    %1959 = vsyncpa [#allocation3], 1
    %s1960 = scalar_lea.sflag [#allocation3], 1
    %1961 = vsyncpa %s1960, 1
    %1962 = vsyncpa [#allocation6], 1
    %1963 = vsyncpa [#allocation4], 1
    %s1964 = scalar_lea.sflag [#allocation4], 1
    %1965 = vsyncpa %s1964, 1

</llo_original>
